<compile_context>
chip_gen: v7x
topology: tpu7x:2x2x1
jax: 0.10.0
libtpu: 0.0.40
codegen_flags: <defaults>
</compile_context>

<pallas_src>
import jax
import jax.numpy as jnp
from jax import lax
from jax.experimental import pallas as pl
from jax.experimental.pallas import tpu as pltpu


def birnn_kernel(x_ref, wx_ref, bh_ref, whf_ref, whb_ref, wy_ref, by_ref, y_ref):
    T = x_ref.shape[0]
    H = whf_ref.shape[0]

    # ---- hoisted input projection for BOTH directions (single MXU matmul) ----
    # xw[:, :H]  = x @ Wx_f^T + bh_f^T   (forward pre-activation per step)
    # xw[:, H:]  = x @ Wx_b^T + bh_b^T   (backward pre-activation per step)
    xw = (jnp.dot(x_ref[...], wx_ref[...], preferred_element_type=jnp.float32)
          + bh_ref[...])                                          # (T, 2H)

    whf = whf_ref[...]                                            # (H, H) = Wh_f^T
    whb = whb_ref[...]                                            # (H, H) = Wh_b^T

    hf = jnp.zeros((1, H), jnp.float32)
    hb = jnp.zeros((1, H), jnp.float32)
    hf_rows = [None] * T
    hb_rows = [None] * T

    # ---- fused, statically-unrolled recurrence ----
    # Iteration t advances the forward chain at time t and the backward chain
    # at time T-1-t; the two chains are independent so their MXU pushes and
    # tanh (EUP) latencies overlap instead of running back-to-back.
    for t in range(T):
        tb = T - 1 - t
        hf = jnp.tanh(xw[t:t + 1, :H]
                      + jnp.dot(hf, whf, preferred_element_type=jnp.float32))
        hb = jnp.tanh(xw[tb:tb + 1, H:]
                      + jnp.dot(hb, whb, preferred_element_type=jnp.float32))
        hf_rows[t] = hf
        hb_rows[tb] = hb

    # Assemble the full (T, 2H) hidden history once (no per-step masked stores).
    h_all = jnp.concatenate(
        [jnp.concatenate(hf_rows, axis=0),        # (T, H) forward, time order
         jnp.concatenate(hb_rows, axis=0)],       # (T, H) backward, time order
        axis=1)                                   # (T, 2H)

    # ---- single output projection: (T, 2H) @ (2H, O) + by ----
    # TODO(synk): output last dim O < 128 lanes -> masked stores; pad if O/T scale up.
    y_ref[...] = (jnp.dot(h_all, wy_ref[...], preferred_element_type=jnp.float32)
                  + by_ref[...])


def birnn_forward(x, params):
    T, I = x.shape
    H = params["Wx_forward"].shape[0]
    O = params["Wy_forward"].shape[0]

    # Pre-transpose / concatenate weights so the kernel sees lane-dense layouts.
    wx_cat = jnp.concatenate([params["Wx_forward"].T,
                              params["Wx_backward"].T], axis=1)   # (I, 2H)
    bh_cat = jnp.concatenate([params["bh_forward"].T,
                              params["bh_backward"].T], axis=1)   # (1, 2H)
    wy_cat = jnp.concatenate([params["Wy_forward"].T,
                              params["Wy_backward"].T], axis=0)   # (2H, O)

    args = (
        x.astype(jnp.float32),                                    # (T, I)
        wx_cat, bh_cat,
        params["Wh_forward"].T, params["Wh_backward"].T,          # (H, H) each
        wy_cat, params["by"].T,                                   # (2H, O), (1, O)
    )

    y = pl.pallas_call(
        birnn_kernel,
        out_shape=jax.ShapeDtypeStruct((T, O), jnp.float32),
        in_specs=[pl.BlockSpec(memory_space=pltpu.MemorySpace.VMEM)] * len(args),
        out_specs=pl.BlockSpec(memory_space=pltpu.MemorySpace.VMEM),
    )(*args)
    return y.reshape(-1)


def birnn_reference(x, p):
    """Pure-JAX reference mirroring the PyTorch forward exactly."""
    H = p["Wx_forward"].shape[0]
    h0 = jnp.zeros((H, 1), jnp.float32)

    def fwd_step(h, x_t):
        h_new = jnp.tanh(p["Wx_forward"] @ x_t[:, None]
                         + p["Wh_forward"] @ h + p["bh_forward"])
        return h_new, h_new

    _, hf = lax.scan(fwd_step, h0, x)

    def bwd_step(h, x_t):
        h_new = jnp.tanh(p["Wx_backward"] @ x_t[:, None]
                         + p["Wh_backward"] @ h + p["bh_backward"])
        return h_new, h_new

    _, hb_rev = lax.scan(bwd_step, h0, x[::-1])
    hb = hb_rev[::-1]

    y = (jnp.einsum("oh,thi->toi", p["Wy_forward"], hf)
         + jnp.einsum("oh,thi->toi", p["Wy_backward"], hb)
         + p["by"][None, :, :])
    return y.reshape(-1)


def init_params(key, input_size, hidden_size, output_size):
    ks = jax.random.split(key, 6)
    sx = jnp.sqrt(2.0 / (input_size + hidden_size))
    sh = jnp.sqrt(1.0 / hidden_size)
    sy = jnp.sqrt(2.0 / (hidden_size + output_size))
    return {
        "Wx_forward":  jax.random.normal(ks[0], (hidden_size, input_size), jnp.float32) * sx,
        "Wh_forward":  jax.random.normal(ks[1], (hidden_size, hidden_size), jnp.float32) * sh,
        "bh_forward":  jnp.zeros((hidden_size, 1), jnp.float32),
        "Wx_backward": jax.random.normal(ks[2], (hidden_size, input_size), jnp.float32) * sx,
        "Wh_backward": jax.random.normal(ks[3], (hidden_size, hidden_size), jnp.float32) * sh,
        "bh_backward": jnp.zeros((hidden_size, 1), jnp.float32),
        "Wy_forward":  jax.random.normal(ks[4], (output_size, hidden_size), jnp.float32) * sy,
        "Wy_backward": jax.random.normal(ks[5], (output_size, hidden_size), jnp.float32) * sy,
        "by":          jnp.zeros((output_size, 1), jnp.float32),
    }


if __name__ == "__main__":
    T, input_size, hidden_size, output_size = 8, 16, 32, 8

    key = jax.random.PRNGKey(0)
    k_param, k_x = jax.random.split(key)
    params = init_params(k_param, input_size, hidden_size, output_size)
    x = jax.random.normal(k_x, (T, input_size), jnp.float32)

    y_kernel = jax.block_until_ready(birnn_forward(x, params))
    y_ref = jax.block_until_ready(birnn_reference(x, params))

    assert y_kernel.shape == (T * output_size,)
    assert jnp.allclose(y_kernel, y_ref, atol=1e-4, rtol=1e-4), (
        "mismatch vs reference: max abs diff = "
        f"{float(jnp.max(jnp.abs(y_kernel - y_ref)))}")

    print("KERNEL_OK")
</pallas_src>

<mosaic_0001>
module attributes {stable_mosaic.version = 11 : i64} {
  func.func @birnn_kernel(%arg0: memref<8x16xf32, #tpu.memory_space<vmem>>, %arg1: memref<16x64xf32, #tpu.memory_space<vmem>>, %arg2: memref<1x64xf32, #tpu.memory_space<vmem>>, %arg3: memref<32x32xf32, #tpu.memory_space<vmem>>, %arg4: memref<32x32xf32, #tpu.memory_space<vmem>>, %arg5: memref<64x8xf32, #tpu.memory_space<vmem>>, %arg6: memref<1x8xf32, #tpu.memory_space<vmem>>, %arg7: memref<8x8xf32, #tpu.memory_space<vmem>>) attributes {dimension_semantics = [], scalar_prefetch = 0 : i64, scratch_operands = 0 : i64, tpu.core_type = #tpu.core_type<tc>} {
    %c0 = arith.constant 0 : index
    %c0_0 = arith.constant 0 : index
    %0 = vector.load %arg0[%c0, %c0_0] : memref<8x16xf32, #tpu.memory_space<vmem>>, vector<8x16xf32>
    %c0_1 = arith.constant 0 : index
    %c0_2 = arith.constant 0 : index
    %1 = vector.load %arg1[%c0_1, %c0_2] : memref<16x64xf32, #tpu.memory_space<vmem>>, vector<16x64xf32>
    %cst = arith.constant dense<0.000000e+00> : vector<8x64xf32>
    %2 = tpu.matmul %0, %1, %cst {dimension_numbers = #tpu.dot_dimension_numbers<[1], [0], [0], [1], [0, 0, 1, 1], [], []>} : vector<8x16xf32>, vector<16x64xf32>, vector<8x64xf32> -> vector<8x64xf32>
    %c0_3 = arith.constant 0 : index
    %c0_4 = arith.constant 0 : index
    %3 = vector.load %arg2[%c0_3, %c0_4] : memref<1x64xf32, #tpu.memory_space<vmem>>, vector<1x64xf32>
    %4 = vector.broadcast %3 : vector<1x64xf32> to vector<8x64xf32>
    %5 = arith.addf %2, %4 : vector<8x64xf32>
    %c0_5 = arith.constant 0 : index
    %c0_6 = arith.constant 0 : index
    %6 = vector.load %arg3[%c0_5, %c0_6] : memref<32x32xf32, #tpu.memory_space<vmem>>, vector<32x32xf32>
    %c0_7 = arith.constant 0 : index
    %c0_8 = arith.constant 0 : index
    %7 = vector.load %arg4[%c0_7, %c0_8] : memref<32x32xf32, #tpu.memory_space<vmem>>, vector<32x32xf32>
    %cst_9 = arith.constant 0.000000e+00 : f32
    %8 = vector.broadcast %cst_9 : f32 to vector<1x32xf32>
    %cst_10 = arith.constant 0.000000e+00 : f32
    %9 = vector.broadcast %cst_10 : f32 to vector<1x32xf32>
    %10 = vector.extract_strided_slice %5 {offsets = [0, 0], sizes = [1, 32], strides = [1, 1]} : vector<8x64xf32> to vector<1x32xf32>
    %cst_11 = arith.constant dense<0.000000e+00> : vector<1x32xf32>
    %11 = tpu.matmul %8, %6, %cst_11 {dimension_numbers = #tpu.dot_dimension_numbers<[1], [0], [0], [1], [0, 0, 1, 1], [], []>} : vector<1x32xf32>, vector<32x32xf32>, vector<1x32xf32> -> vector<1x32xf32>
    %12 = arith.addf %10, %11 : vector<1x32xf32>
    %13 = math.tanh %12 : vector<1x32xf32>
    %14 = vector.extract_strided_slice %5 {offsets = [7, 32], sizes = [1, 32], strides = [1, 1]} : vector<8x64xf32> to vector<1x32xf32>
    %cst_12 = arith.constant dense<0.000000e+00> : vector<1x32xf32>
    %15 = tpu.matmul %9, %7, %cst_12 {dimension_numbers = #tpu.dot_dimension_numbers<[1], [0], [0], [1], [0, 0, 1, 1], [], []>} : vector<1x32xf32>, vector<32x32xf32>, vector<1x32xf32> -> vector<1x32xf32>
    %16 = arith.addf %14, %15 : vector<1x32xf32>
    %17 = math.tanh %16 : vector<1x32xf32>
    %18 = vector.extract_strided_slice %5 {offsets = [1, 0], sizes = [1, 32], strides = [1, 1]} : vector<8x64xf32> to vector<1x32xf32>
    %cst_13 = arith.constant dense<0.000000e+00> : vector<1x32xf32>
    %19 = tpu.matmul %13, %6, %cst_13 {dimension_numbers = #tpu.dot_dimension_numbers<[1], [0], [0], [1], [0, 0, 1, 1], [], []>} : vector<1x32xf32>, vector<32x32xf32>, vector<1x32xf32> -> vector<1x32xf32>
    %20 = arith.addf %18, %19 : vector<1x32xf32>
    %21 = math.tanh %20 : vector<1x32xf32>
    %22 = vector.extract_strided_slice %5 {offsets = [6, 32], sizes = [1, 32], strides = [1, 1]} : vector<8x64xf32> to vector<1x32xf32>
    %cst_14 = arith.constant dense<0.000000e+00> : vector<1x32xf32>
    %23 = tpu.matmul %17, %7, %cst_14 {dimension_numbers = #tpu.dot_dimension_numbers<[1], [0], [0], [1], [0, 0, 1, 1], [], []>} : vector<1x32xf32>, vector<32x32xf32>, vector<1x32xf32> -> vector<1x32xf32>
    %24 = arith.addf %22, %23 : vector<1x32xf32>
    %25 = math.tanh %24 : vector<1x32xf32>
    %26 = vector.extract_strided_slice %5 {offsets = [2, 0], sizes = [1, 32], strides = [1, 1]} : vector<8x64xf32> to vector<1x32xf32>
    %cst_15 = arith.constant dense<0.000000e+00> : vector<1x32xf32>
    %27 = tpu.matmul %21, %6, %cst_15 {dimension_numbers = #tpu.dot_dimension_numbers<[1], [0], [0], [1], [0, 0, 1, 1], [], []>} : vector<1x32xf32>, vector<32x32xf32>, vector<1x32xf32> -> vector<1x32xf32>
    %28 = arith.addf %26, %27 : vector<1x32xf32>
    %29 = math.tanh %28 : vector<1x32xf32>
    %30 = vector.extract_strided_slice %5 {offsets = [5, 32], sizes = [1, 32], strides = [1, 1]} : vector<8x64xf32> to vector<1x32xf32>
    %cst_16 = arith.constant dense<0.000000e+00> : vector<1x32xf32>
    %31 = tpu.matmul %25, %7, %cst_16 {dimension_numbers = #tpu.dot_dimension_numbers<[1], [0], [0], [1], [0, 0, 1, 1], [], []>} : vector<1x32xf32>, vector<32x32xf32>, vector<1x32xf32> -> vector<1x32xf32>
    %32 = arith.addf %30, %31 : vector<1x32xf32>
    %33 = math.tanh %32 : vector<1x32xf32>
    %34 = vector.extract_strided_slice %5 {offsets = [3, 0], sizes = [1, 32], strides = [1, 1]} : vector<8x64xf32> to vector<1x32xf32>
    %cst_17 = arith.constant dense<0.000000e+00> : vector<1x32xf32>
    %35 = tpu.matmul %29, %6, %cst_17 {dimension_numbers = #tpu.dot_dimension_numbers<[1], [0], [0], [1], [0, 0, 1, 1], [], []>} : vector<1x32xf32>, vector<32x32xf32>, vector<1x32xf32> -> vector<1x32xf32>
    %36 = arith.addf %34, %35 : vector<1x32xf32>
    %37 = math.tanh %36 : vector<1x32xf32>
    %38 = vector.extract_strided_slice %5 {offsets = [4, 32], sizes = [1, 32], strides = [1, 1]} : vector<8x64xf32> to vector<1x32xf32>
    %cst_18 = arith.constant dense<0.000000e+00> : vector<1x32xf32>
    %39 = tpu.matmul %33, %7, %cst_18 {dimension_numbers = #tpu.dot_dimension_numbers<[1], [0], [0], [1], [0, 0, 1, 1], [], []>} : vector<1x32xf32>, vector<32x32xf32>, vector<1x32xf32> -> vector<1x32xf32>
    %40 = arith.addf %38, %39 : vector<1x32xf32>
    %41 = math.tanh %40 : vector<1x32xf32>
    %42 = vector.extract_strided_slice %5 {offsets = [4, 0], sizes = [1, 32], strides = [1, 1]} : vector<8x64xf32> to vector<1x32xf32>
    %cst_19 = arith.constant dense<0.000000e+00> : vector<1x32xf32>
    %43 = tpu.matmul %37, %6, %cst_19 {dimension_numbers = #tpu.dot_dimension_numbers<[1], [0], [0], [1], [0, 0, 1, 1], [], []>} : vector<1x32xf32>, vector<32x32xf32>, vector<1x32xf32> -> vector<1x32xf32>
    %44 = arith.addf %42, %43 : vector<1x32xf32>
    %45 = math.tanh %44 : vector<1x32xf32>
    %46 = vector.extract_strided_slice %5 {offsets = [3, 32], sizes = [1, 32], strides = [1, 1]} : vector<8x64xf32> to vector<1x32xf32>
    %cst_20 = arith.constant dense<0.000000e+00> : vector<1x32xf32>
    %47 = tpu.matmul %41, %7, %cst_20 {dimension_numbers = #tpu.dot_dimension_numbers<[1], [0], [0], [1], [0, 0, 1, 1], [], []>} : vector<1x32xf32>, vector<32x32xf32>, vector<1x32xf32> -> vector<1x32xf32>
    %48 = arith.addf %46, %47 : vector<1x32xf32>
    %49 = math.tanh %48 : vector<1x32xf32>
    %50 = vector.extract_strided_slice %5 {offsets = [5, 0], sizes = [1, 32], strides = [1, 1]} : vector<8x64xf32> to vector<1x32xf32>
    %cst_21 = arith.constant dense<0.000000e+00> : vector<1x32xf32>
    %51 = tpu.matmul %45, %6, %cst_21 {dimension_numbers = #tpu.dot_dimension_numbers<[1], [0], [0], [1], [0, 0, 1, 1], [], []>} : vector<1x32xf32>, vector<32x32xf32>, vector<1x32xf32> -> vector<1x32xf32>
    %52 = arith.addf %50, %51 : vector<1x32xf32>
    %53 = math.tanh %52 : vector<1x32xf32>
    %54 = vector.extract_strided_slice %5 {offsets = [2, 32], sizes = [1, 32], strides = [1, 1]} : vector<8x64xf32> to vector<1x32xf32>
    %cst_22 = arith.constant dense<0.000000e+00> : vector<1x32xf32>
    %55 = tpu.matmul %49, %7, %cst_22 {dimension_numbers = #tpu.dot_dimension_numbers<[1], [0], [0], [1], [0, 0, 1, 1], [], []>} : vector<1x32xf32>, vector<32x32xf32>, vector<1x32xf32> -> vector<1x32xf32>
    %56 = arith.addf %54, %55 : vector<1x32xf32>
    %57 = math.tanh %56 : vector<1x32xf32>
    %58 = vector.extract_strided_slice %5 {offsets = [6, 0], sizes = [1, 32], strides = [1, 1]} : vector<8x64xf32> to vector<1x32xf32>
    %cst_23 = arith.constant dense<0.000000e+00> : vector<1x32xf32>
    %59 = tpu.matmul %53, %6, %cst_23 {dimension_numbers = #tpu.dot_dimension_numbers<[1], [0], [0], [1], [0, 0, 1, 1], [], []>} : vector<1x32xf32>, vector<32x32xf32>, vector<1x32xf32> -> vector<1x32xf32>
    %60 = arith.addf %58, %59 : vector<1x32xf32>
    %61 = math.tanh %60 : vector<1x32xf32>
    %62 = vector.extract_strided_slice %5 {offsets = [1, 32], sizes = [1, 32], strides = [1, 1]} : vector<8x64xf32> to vector<1x32xf32>
    %cst_24 = arith.constant dense<0.000000e+00> : vector<1x32xf32>
    %63 = tpu.matmul %57, %7, %cst_24 {dimension_numbers = #tpu.dot_dimension_numbers<[1], [0], [0], [1], [0, 0, 1, 1], [], []>} : vector<1x32xf32>, vector<32x32xf32>, vector<1x32xf32> -> vector<1x32xf32>
    %64 = arith.addf %62, %63 : vector<1x32xf32>
    %65 = math.tanh %64 : vector<1x32xf32>
    %66 = vector.extract_strided_slice %5 {offsets = [7, 0], sizes = [1, 32], strides = [1, 1]} : vector<8x64xf32> to vector<1x32xf32>
    %cst_25 = arith.constant dense<0.000000e+00> : vector<1x32xf32>
    %67 = tpu.matmul %61, %6, %cst_25 {dimension_numbers = #tpu.dot_dimension_numbers<[1], [0], [0], [1], [0, 0, 1, 1], [], []>} : vector<1x32xf32>, vector<32x32xf32>, vector<1x32xf32> -> vector<1x32xf32>
    %68 = arith.addf %66, %67 : vector<1x32xf32>
    %69 = math.tanh %68 : vector<1x32xf32>
    %70 = vector.extract_strided_slice %5 {offsets = [0, 32], sizes = [1, 32], strides = [1, 1]} : vector<8x64xf32> to vector<1x32xf32>
    %cst_26 = arith.constant dense<0.000000e+00> : vector<1x32xf32>
    %71 = tpu.matmul %65, %7, %cst_26 {dimension_numbers = #tpu.dot_dimension_numbers<[1], [0], [0], [1], [0, 0, 1, 1], [], []>} : vector<1x32xf32>, vector<32x32xf32>, vector<1x32xf32> -> vector<1x32xf32>
    %72 = arith.addf %70, %71 : vector<1x32xf32>
    %73 = math.tanh %72 : vector<1x32xf32>
    %74 = tpu.concatenate %13, %21, %29, %37, %45, %53, %61, %69 in 0 : vector<1x32xf32>, vector<1x32xf32>, vector<1x32xf32>, vector<1x32xf32>, vector<1x32xf32>, vector<1x32xf32>, vector<1x32xf32>, vector<1x32xf32> -> vector<8x32xf32>
    %75 = tpu.concatenate %73, %65, %57, %49, %41, %33, %25, %17 in 0 : vector<1x32xf32>, vector<1x32xf32>, vector<1x32xf32>, vector<1x32xf32>, vector<1x32xf32>, vector<1x32xf32>, vector<1x32xf32>, vector<1x32xf32> -> vector<8x32xf32>
    %76 = tpu.concatenate %74, %75 in 1 : vector<8x32xf32>, vector<8x32xf32> -> vector<8x64xf32>
    %c0_27 = arith.constant 0 : index
    %c0_28 = arith.constant 0 : index
    %77 = vector.load %arg5[%c0_27, %c0_28] : memref<64x8xf32, #tpu.memory_space<vmem>>, vector<64x8xf32>
    %cst_29 = arith.constant dense<0.000000e+00> : vector<8x8xf32>
    %78 = tpu.matmul %76, %77, %cst_29 {dimension_numbers = #tpu.dot_dimension_numbers<[1], [0], [0], [1], [0, 0, 1, 1], [], []>} : vector<8x64xf32>, vector<64x8xf32>, vector<8x8xf32> -> vector<8x8xf32>
    %c0_30 = arith.constant 0 : index
    %c0_31 = arith.constant 0 : index
    %79 = vector.load %arg6[%c0_30, %c0_31] : memref<1x8xf32, #tpu.memory_space<vmem>>, vector<1x8xf32>
    %80 = vector.broadcast %79 : vector<1x8xf32> to vector<8x8xf32>
    %81 = arith.addf %78, %80 : vector<8x8xf32>
    %c0_32 = arith.constant 0 : index
    %c0_33 = arith.constant 0 : index
    %82 = vector.load %arg7[%c0_32, %c0_33] : memref<8x8xf32, #tpu.memory_space<vmem>>, vector<8x8xf32>
    tpu.vector_store %arg7[%c0_32, %c0_33], %81 {strides = array<i32>} : memref<8x8xf32, #tpu.memory_space<vmem>>, vector<8x8xf32>,
    return
  }
}

</mosaic_0001>

<llo_original>
// kernel: tpu_custom_call.1
$region0: #{tpu_custom_call.1}
  #allocation0 [shape = 'u32[]', space=smem, size = 0x4, offset = 0x4, fixed_abs, tag = 'smem constant byte address 0x4 - core index']
  #allocation1 [shape = 'u32[144,128]{1,0:T(1,128)}', space=vmem, size = 0x12000, scoped, tag = 'internal scratch']
  %s0 = inlined_call_operand.vmem [shape: f32[8,16], index: 0, kind: input, shape index: {}]
  %s1 = inlined_call_operand.hbm [shape: f32[16,64], index: 1, kind: input, shape index: {}]
  %s2 = inlined_call_operand.vmem [shape: f32[1,64], index: 2, kind: input, shape index: {}]
  %s3 = inlined_call_operand.vmem [shape: f32[32,32], index: 3, kind: input, shape index: {}]
  %s4 = inlined_call_operand.vmem [shape: f32[32,32], index: 4, kind: input, shape index: {}]
  %s5 = inlined_call_operand.vmem [shape: f32[64,8], index: 5, kind: input, shape index: {}]
  %s6 = inlined_call_operand.vmem [shape: f32[1,8], index: 6, kind: input, shape index: {}]
  %s7 = inlined_call_operand.hbm [shape: f32[8,8], index: 7, kind: output, shape index: {}]
  %s8 = sld [smem:[#allocation0]]
  $region42: #{tpu_custom_call.1} parent=0
    _
  %s10 = ssub.s32 1, %s8
  %s11 = scalar_select 0, %s10, %s8
  $region1: #{tpu_custom_call.1} parent=0
    #allocation2 [shape = 'u8[8192]{0}', space=vmem, size = 0x2000, scoped, tag = 'input window, operand 1, single buffered']
    #allocation3 [shape = 's32[1]{0}', space=sflag, size = 0x4, scoped, tag = 'scoped memory for tpu_custom_call.1']
    #allocation4 [shape = 's32[1]{0}', space=sflag, size = 0x4, scoped, tag = 'scoped memory for tpu_custom_call.1']
    #allocation5 [shape = 'u8[4096]{0}', space=vmem, size = 0x1000, scoped, tag = 'output window, operand 0, single buffered']
    %12 = vsyncpa [#allocation3], 0
    %13 = vsyncpa [#allocation4], 0
    // Predicated region
    $region2: #{tpu_custom_call.1} parent=1 // pred_check
      _
    $region3: #{tpu_custom_call.1} parent=1 // pred_check_branch
      %15 = sbr.rel (0) target = $region5
    $region4: #{tpu_custom_call.1} parent=1 // pred_region
      _
    $region5: #{tpu_custom_call.1} parent=1 // pred_fallthru
      _
    // Predicated region
    $region6: #{tpu_custom_call.1} parent=1 // pred_check
      _
    $region7: #{tpu_custom_call.1} parent=1 // pred_check_branch
      %17 = sbr.rel (0) target = $region9
    $region8: #{tpu_custom_call.1} parent=1 // pred_region
      %s19 = ssub.s32 256, 256
      %20 = vsyncadd [#allocation3], %s19
      %s21 = sshll.u32 [#allocation2], 4
      %s22 = int_to_ptr.vmem [resolvable:$true] %s21
      %27 = dma.hbm_to_vmem [thread:$0]  %s1, 256, %s22, [#allocation3], 128, 128, 8
    $region9: #{tpu_custom_call.1} parent=1 // pred_fallthru
      _
    // Predicated region
    $region10: #{tpu_custom_call.1} parent=1 // pred_check
      _
    $region11: #{tpu_custom_call.1} parent=1 // pred_check_branch
      %29 = sbr.rel (0) target = $region13
    $region12: #{tpu_custom_call.1} parent=1 // pred_region
      _
    $region13: #{tpu_custom_call.1} parent=1 // pred_fallthru
      _
    // Predicated region
    $region14: #{tpu_custom_call.1} parent=1 // pred_check
      _
    $region15: #{tpu_custom_call.1} parent=1 // pred_check_branch
      %31 = sbr.rel (0) target = $region17
    $region16: #{tpu_custom_call.1} parent=1 // pred_region
      _
    $region17: #{tpu_custom_call.1} parent=1 // pred_fallthru
      _
    // Predicated region
    $region18: #{tpu_custom_call.1} parent=1 // pred_check
      _
    $region19: #{tpu_custom_call.1} parent=1 // pred_check_branch
      %33 = sbr.rel (0) target = $region21
    $region20: #{tpu_custom_call.1} parent=1 // pred_region
      _
    $region21: #{tpu_custom_call.1} parent=1 // pred_fallthru
      _
    // Predicated region
    $region22: #{tpu_custom_call.1} parent=1 // pred_check
      _
    $region23: #{tpu_custom_call.1} parent=1 // pred_check_branch
      %35 = sbr.rel (0) target = $region25
    $region24: #{tpu_custom_call.1} parent=1 // pred_region
      _
    $region25: #{tpu_custom_call.1} parent=1 // pred_fallthru
      _
    // Predicated region
    $region26: #{tpu_custom_call.1} parent=1 // pred_check
      _
    $region27: #{tpu_custom_call.1} parent=1 // pred_check_branch
      %37 = sbr.rel (0) target = $region29
    $region28: #{tpu_custom_call.1} parent=1 // pred_region
      _
    $region29: #{tpu_custom_call.1} parent=1 // pred_fallthru
      _
    // Predicated region
    $region30: #{tpu_custom_call.1} parent=1 // pred_check
      _
    $region31: #{tpu_custom_call.1} parent=1 // pred_check_branch
      %39 = sbr.rel (0) target = $region33
    $region32: #{tpu_custom_call.1} parent=1 // pred_region
      %40 = dma.done [#allocation3], 256
    $region33: #{tpu_custom_call.1} parent=1 // pred_fallthru
      _
    %v41 = vld [vmem:[%s0] sm:$0xff]
    %v42 = vld [vmem:[#allocation2] sm:$0xff]
    %v43 = vld [vmem:[#allocation2 + $0x8] sm:$0xff]
    %v44 = vld [vmem:[%s2] sm:$0x1]
    %v46 = vlaneseq
    %v47 = vshrl.u32 %v46, 7
    %v48 = vsub.s32 0, %v47
    %v49 = vrot.slane %v44, %v48
    %vm51 = vcmask 130048
    %v53 = vsel %vm51, %v41, 0
    %55 = vmatprep.subr.mxu0 0.0
    %56 = vmatpush1.msra.mxu0 %v42
    %57 = vmatprep.subr.mxu0 0.0
    %58 = vmatpush1.msra.mxu0 %v43
    %59 = vmatprep.subr.mxu0 0.0
    %60 = vmatpush1.msra.mxu0 0.0
    %61 = vmatprep.subr.mxu0 0.0
    %62 = vmatpush1.msra.mxu0 0.0
    %63 = vmatprep.subr.mxu0 0.0
    %64 = vmatpush1.msra.mxu0 0.0
    %65 = vmatprep.subr.mxu0 0.0
    %66 = vmatpush1.msra.mxu0 0.0
    %67 = vmatprep.subr.mxu0 0.0
    %68 = vmatpush1.msra.mxu0 0.0
    %69 = vmatprep.subr.mxu0 0.0
    %70 = vmatpush1.msra.mxu0 0.0
    %71 = vmatprep.subr.mxu0 0.0
    %72 = vmatpush1.msra.mxu0 0.0
    %73 = vmatprep.subr.mxu0 0.0
    %74 = vmatpush1.msra.mxu0 0.0
    %75 = vmatprep.subr.mxu0 0.0
    %76 = vmatpush1.msra.mxu0 0.0
    %77 = vmatprep.subr.mxu0 0.0
    %78 = vmatpush1.msra.mxu0 0.0
    %79 = vmatprep.subr.mxu0 0.0
    %80 = vmatpush1.msra.mxu0 0.0
    %81 = vmatprep.subr.mxu0 0.0
    %82 = vmatpush1.msra.mxu0 0.0
    %83 = vmatprep.subr.mxu0 0.0
    %84 = vmatpush1.msra.mxu0 0.0
    %85 = vmatprep.subr.mxu0 0.0
    %86 = vmatpush1.msra.mxu0 0.0
    %87 = vmatprep.subr.mxu0 0.0
    %88 = vmatpush1.msra.mxu0 0.0
    %89 = vmatprep.subr.mxu0 0.0
    %90 = vmatpush1.msra.mxu0 0.0
    %91 = vmatprep.subr.mxu0 0.0
    %92 = vmatpush1.msra.mxu0 0.0
    %93 = vmatprep.subr.mxu0 0.0
    %94 = vmatpush1.msra.mxu0 0.0
    %95 = vmatprep.subr.mxu0 0.0
    %96 = vmatpush1.msra.mxu0 0.0
    %97 = vmatprep.subr.mxu0 0.0
    %98 = vmatpush1.msra.mxu0 0.0
    %99 = vmatprep.subr.mxu0 0.0
    %100 = vmatpush1.msra.mxu0 0.0
    %101 = vmatprep.subr.mxu0 0.0
    %102 = vmatpush1.msra.mxu0 0.0
    %103 = vmatprep.subr.mxu0 0.0
    %104 = vmatpush1.msra.mxu0 0.0
    %105 = vmatprep.subr.mxu0 0.0
    %106 = vmatpush1.msra.mxu0 0.0
    %107 = vmatprep.subr.mxu0 0.0
    %108 = vmatpush1.msra.mxu0 0.0
    %109 = vmatprep.subr.mxu0 0.0
    %110 = vmatpush1.msra.mxu0 0.0
    %111 = vmatprep.subr.mxu0 0.0
    %112 = vmatpush1.msra.mxu0 0.0
    %113 = vmatprep.subr.mxu0 0.0
    %114 = vmatpush1.msra.mxu0 0.0
    %115 = vmatprep.subr.mxu0 0.0
    %116 = vmatpush1.msra.mxu0 0.0
    %117 = vmatprep.subr.mxu0 0.0
    %118 = vmatpush1.msra.mxu0 0.0
    %119 = vmatprep.mubr.f32.mxu0 0.0
    %120 = vmatmul.mubr.f32.gmra.mrb[0].mxu0 %v53
    %v121 = vpop.f32.mrb[0].mxu0
    %v122 = vadd.f32 %v49, %v121
    %v123 = vpop.f32.mrb[0].mxu0
    %124 = vdwg.mxu0
    %v125 = vld [vmem:[%s3] sm:$0xff]
    %v126 = vld [vmem:[%s3 + $0x8] sm:$0xff]
    %v127 = vld [vmem:[%s3 + $0x10] sm:$0xff]
    %v128 = vld [vmem:[%s3 + $0x18] sm:$0xff]
    %v129 = vld [vmem:[%s4] sm:$0xff]
    %v130 = vld [vmem:[%s4 + $0x8] sm:$0xff]
    %v131 = vld [vmem:[%s4 + $0x10] sm:$0xff]
    %v132 = vld [vmem:[%s4 + $0x18] sm:$0xff]
    %vm133 = vcmask 261120
    %v135 = vsel %vm133, 0.0, 0
    %137 = vmatprep.subr.mxu0 0.0
    %138 = vmatpush1.msra.mxu0 %v125
    %139 = vmatprep.subr.mxu0 0.0
    %140 = vmatpush1.msra.mxu0 %v126
    %141 = vmatprep.subr.mxu0 0.0
    %142 = vmatpush1.msra.mxu0 %v127
    %143 = vmatprep.subr.mxu0 0.0
    %144 = vmatpush1.msra.mxu0 %v128
    %145 = vmatprep.subr.mxu0 0.0
    %146 = vmatpush1.msra.mxu0 0.0
    %147 = vmatprep.subr.mxu0 0.0
    %148 = vmatpush1.msra.mxu0 0.0
    %149 = vmatprep.subr.mxu0 0.0
    %150 = vmatpush1.msra.mxu0 0.0
    %151 = vmatprep.subr.mxu0 0.0
    %152 = vmatpush1.msra.mxu0 0.0
    %153 = vmatprep.subr.mxu0 0.0
    %154 = vmatpush1.msra.mxu0 0.0
    %155 = vmatprep.subr.mxu0 0.0
    %156 = vmatpush1.msra.mxu0 0.0
    %157 = vmatprep.subr.mxu0 0.0
    %158 = vmatpush1.msra.mxu0 0.0
    %159 = vmatprep.subr.mxu0 0.0
    %160 = vmatpush1.msra.mxu0 0.0
    %161 = vmatprep.subr.mxu0 0.0
    %162 = vmatpush1.msra.mxu0 0.0
    %163 = vmatprep.subr.mxu0 0.0
    %164 = vmatpush1.msra.mxu0 0.0
    %165 = vmatprep.subr.mxu0 0.0
    %166 = vmatpush1.msra.mxu0 0.0
    %167 = vmatprep.subr.mxu0 0.0
    %168 = vmatpush1.msra.mxu0 0.0
    %169 = vmatprep.subr.mxu0 0.0
    %170 = vmatpush1.msra.mxu0 0.0
    %171 = vmatprep.subr.mxu0 0.0
    %172 = vmatpush1.msra.mxu0 0.0
    %173 = vmatprep.subr.mxu0 0.0
    %174 = vmatpush1.msra.mxu0 0.0
    %175 = vmatprep.subr.mxu0 0.0
    %176 = vmatpush1.msra.mxu0 0.0
    %177 = vmatprep.subr.mxu0 0.0
    %178 = vmatpush1.msra.mxu0 0.0
    %179 = vmatprep.subr.mxu0 0.0
    %180 = vmatpush1.msra.mxu0 0.0
    %181 = vmatprep.subr.mxu0 0.0
    %182 = vmatpush1.msra.mxu0 0.0
    %183 = vmatprep.subr.mxu0 0.0
    %184 = vmatpush1.msra.mxu0 0.0
    %185 = vmatprep.subr.mxu0 0.0
    %186 = vmatpush1.msra.mxu0 0.0
    %187 = vmatprep.subr.mxu0 0.0
    %188 = vmatpush1.msra.mxu0 0.0
    %189 = vmatprep.subr.mxu0 0.0
    %190 = vmatpush1.msra.mxu0 0.0
    %191 = vmatprep.subr.mxu0 0.0
    %192 = vmatpush1.msra.mxu0 0.0
    %193 = vmatprep.subr.mxu0 0.0
    %194 = vmatpush1.msra.mxu0 0.0
    %195 = vmatprep.subr.mxu0 0.0
    %196 = vmatpush1.msra.mxu0 0.0
    %197 = vmatprep.subr.mxu0 0.0
    %198 = vmatpush1.msra.mxu0 0.0
    %199 = vmatprep.subr.mxu0 0.0
    %200 = vmatpush1.msra.mxu0 0.0
    %201 = vmatprep.mubr.f32.mxu0 0.0
    %202 = vmatmul.mubr.f32.gmra.mrb[0].mxu0 %v135
    %v203 = vpop.f32.mrb[0].mxu0
    %v204 = vadd.f32 0.0, %v203
    %v205 = vpop.f32.mrb[0].mxu0
    %206 = vdwg.mxu0
    %v207 = vadd.f32 %v122, %v204
    %v208 = vtanh.pop %v207
    %209 = vmatprep.subr.mxu0 0.0
    %210 = vmatpush1.msra.mxu0 %v129
    %211 = vmatprep.subr.mxu0 0.0
    %212 = vmatpush1.msra.mxu0 %v130
    %213 = vmatprep.subr.mxu0 0.0
    %214 = vmatpush1.msra.mxu0 %v131
    %215 = vmatprep.subr.mxu0 0.0
    %216 = vmatpush1.msra.mxu0 %v132
    %217 = vmatprep.subr.mxu0 0.0
    %218 = vmatpush1.msra.mxu0 0.0
    %219 = vmatprep.subr.mxu0 0.0
    %220 = vmatpush1.msra.mxu0 0.0
    %221 = vmatprep.subr.mxu0 0.0
    %222 = vmatpush1.msra.mxu0 0.0
    %223 = vmatprep.subr.mxu0 0.0
    %224 = vmatpush1.msra.mxu0 0.0
    %225 = vmatprep.subr.mxu0 0.0
    %226 = vmatpush1.msra.mxu0 0.0
    %227 = vmatprep.subr.mxu0 0.0
    %228 = vmatpush1.msra.mxu0 0.0
    %229 = vmatprep.subr.mxu0 0.0
    %230 = vmatpush1.msra.mxu0 0.0
    %231 = vmatprep.subr.mxu0 0.0
    %232 = vmatpush1.msra.mxu0 0.0
    %233 = vmatprep.subr.mxu0 0.0
    %234 = vmatpush1.msra.mxu0 0.0
    %235 = vmatprep.subr.mxu0 0.0
    %236 = vmatpush1.msra.mxu0 0.0
    %237 = vmatprep.subr.mxu0 0.0
    %238 = vmatpush1.msra.mxu0 0.0
    %239 = vmatprep.subr.mxu0 0.0
    %240 = vmatpush1.msra.mxu0 0.0
    %241 = vmatprep.subr.mxu0 0.0
    %242 = vmatpush1.msra.mxu0 0.0
    %243 = vmatprep.subr.mxu0 0.0
    %244 = vmatpush1.msra.mxu0 0.0
    %245 = vmatprep.subr.mxu0 0.0
    %246 = vmatpush1.msra.mxu0 0.0
    %247 = vmatprep.subr.mxu0 0.0
    %248 = vmatpush1.msra.mxu0 0.0
    %249 = vmatprep.subr.mxu0 0.0
    %250 = vmatpush1.msra.mxu0 0.0
    %251 = vmatprep.subr.mxu0 0.0
    %252 = vmatpush1.msra.mxu0 0.0
    %253 = vmatprep.subr.mxu0 0.0
    %254 = vmatpush1.msra.mxu0 0.0
    %255 = vmatprep.subr.mxu0 0.0
    %256 = vmatpush1.msra.mxu0 0.0
    %257 = vmatprep.subr.mxu0 0.0
    %258 = vmatpush1.msra.mxu0 0.0
    %259 = vmatprep.subr.mxu0 0.0
    %260 = vmatpush1.msra.mxu0 0.0
    %261 = vmatprep.subr.mxu0 0.0
    %262 = vmatpush1.msra.mxu0 0.0
    %263 = vmatprep.subr.mxu0 0.0
    %264 = vmatpush1.msra.mxu0 0.0
    %265 = vmatprep.subr.mxu0 0.0
    %266 = vmatpush1.msra.mxu0 0.0
    %267 = vmatprep.subr.mxu0 0.0
    %268 = vmatpush1.msra.mxu0 0.0
    %269 = vmatprep.subr.mxu0 0.0
    %270 = vmatpush1.msra.mxu0 0.0
    %271 = vmatprep.subr.mxu0 0.0
    %272 = vmatpush1.msra.mxu0 0.0
    %273 = vmatprep.mubr.f32.mxu0 0.0
    %274 = vmatmul.mubr.f32.gmra.mrb[0].mxu0 %v135
    %v275 = vpop.f32.mrb[0].mxu0
    %v276 = vadd.f32 0.0, %v275
    %v277 = vpop.f32.mrb[0].mxu0
    %278 = vdwg.mxu0
    %v280 = vrot.slane %v276, 1
    %281 = vrot.lane.b32.xlu0 %v280, 32
    %v282 = vpop.permute.xlu0 %281
    %v284 = vadd.f32 %v122, %v282
    %v285 = vtanh.pop %v284
    %v287 = vsel %vm133, %v208, 0
    %289 = vmatprep.subr.mxu0 0.0
    %290 = vmatpush1.msra.mxu0 %v125
    %291 = vmatprep.subr.mxu0 0.0
    %292 = vmatpush1.msra.mxu0 %v126
    %293 = vmatprep.subr.mxu0 0.0
    %294 = vmatpush1.msra.mxu0 %v127
    %295 = vmatprep.subr.mxu0 0.0
    %296 = vmatpush1.msra.mxu0 %v128
    %297 = vmatprep.subr.mxu0 0.0
    %298 = vmatpush1.msra.mxu0 0.0
    %299 = vmatprep.subr.mxu0 0.0
    %300 = vmatpush1.msra.mxu0 0.0
    %301 = vmatprep.subr.mxu0 0.0
    %302 = vmatpush1.msra.mxu0 0.0
    %303 = vmatprep.subr.mxu0 0.0
    %304 = vmatpush1.msra.mxu0 0.0
    %305 = vmatprep.subr.mxu0 0.0
    %306 = vmatpush1.msra.mxu0 0.0
    %307 = vmatprep.subr.mxu0 0.0
    %308 = vmatpush1.msra.mxu0 0.0
    %309 = vmatprep.subr.mxu0 0.0
    %310 = vmatpush1.msra.mxu0 0.0
    %311 = vmatprep.subr.mxu0 0.0
    %312 = vmatpush1.msra.mxu0 0.0
    %313 = vmatprep.subr.mxu0 0.0
    %314 = vmatpush1.msra.mxu0 0.0
    %315 = vmatprep.subr.mxu0 0.0
    %316 = vmatpush1.msra.mxu0 0.0
    %317 = vmatprep.subr.mxu0 0.0
    %318 = vmatpush1.msra.mxu0 0.0
    %319 = vmatprep.subr.mxu0 0.0
    %320 = vmatpush1.msra.mxu0 0.0
    %321 = vmatprep.subr.mxu0 0.0
    %322 = vmatpush1.msra.mxu0 0.0
    %323 = vmatprep.subr.mxu0 0.0
    %324 = vmatpush1.msra.mxu0 0.0
    %325 = vmatprep.subr.mxu0 0.0
    %326 = vmatpush1.msra.mxu0 0.0
    %327 = vmatprep.subr.mxu0 0.0
    %328 = vmatpush1.msra.mxu0 0.0
    %329 = vmatprep.subr.mxu0 0.0
    %330 = vmatpush1.msra.mxu0 0.0
    %331 = vmatprep.subr.mxu0 0.0
    %332 = vmatpush1.msra.mxu0 0.0
    %333 = vmatprep.subr.mxu0 0.0
    %334 = vmatpush1.msra.mxu0 0.0
    %335 = vmatprep.subr.mxu0 0.0
    %336 = vmatpush1.msra.mxu0 0.0
    %337 = vmatprep.subr.mxu0 0.0
    %338 = vmatpush1.msra.mxu0 0.0
    %339 = vmatprep.subr.mxu0 0.0
    %340 = vmatpush1.msra.mxu0 0.0
    %341 = vmatprep.subr.mxu0 0.0
    %342 = vmatpush1.msra.mxu0 0.0
    %343 = vmatprep.subr.mxu0 0.0
    %344 = vmatpush1.msra.mxu0 0.0
    %345 = vmatprep.subr.mxu0 0.0
    %346 = vmatpush1.msra.mxu0 0.0
    %347 = vmatprep.subr.mxu0 0.0
    %348 = vmatpush1.msra.mxu0 0.0
    %349 = vmatprep.subr.mxu0 0.0
    %350 = vmatpush1.msra.mxu0 0.0
    %351 = vmatprep.subr.mxu0 0.0
    %352 = vmatpush1.msra.mxu0 0.0
    %353 = vmatprep.mubr.f32.mxu0 0.0
    %354 = vmatmul.mubr.f32.gmra.mrb[0].mxu0 %v287
    %v355 = vpop.f32.mrb[0].mxu0
    %v356 = vadd.f32 0.0, %v355
    %v357 = vpop.f32.mrb[0].mxu0
    %358 = vdwg.mxu0
    %v360 = vrot.slane %v356, 7
    %v362 = vadd.f32 %v122, %v360
    %v363 = vtanh.pop %v362
    %v365 = vrot.slane %v285, 7
    %366 = vrot.lane.b32.xlu0 %v365, 96
    %v367 = vpop.permute.xlu0 %366
    %v368 = vsel %vm133, %v367, 0
    %370 = vmatprep.subr.mxu0 0.0
    %371 = vmatpush1.msra.mxu0 %v129
    %372 = vmatprep.subr.mxu0 0.0
    %373 = vmatpush1.msra.mxu0 %v130
    %374 = vmatprep.subr.mxu0 0.0
    %375 = vmatpush1.msra.mxu0 %v131
    %376 = vmatprep.subr.mxu0 0.0
    %377 = vmatpush1.msra.mxu0 %v132
    %378 = vmatprep.subr.mxu0 0.0
    %379 = vmatpush1.msra.mxu0 0.0
    %380 = vmatprep.subr.mxu0 0.0
    %381 = vmatpush1.msra.mxu0 0.0
    %382 = vmatprep.subr.mxu0 0.0
    %383 = vmatpush1.msra.mxu0 0.0
    %384 = vmatprep.subr.mxu0 0.0
    %385 = vmatpush1.msra.mxu0 0.0
    %386 = vmatprep.subr.mxu0 0.0
    %387 = vmatpush1.msra.mxu0 0.0
    %388 = vmatprep.subr.mxu0 0.0
    %389 = vmatpush1.msra.mxu0 0.0
    %390 = vmatprep.subr.mxu0 0.0
    %391 = vmatpush1.msra.mxu0 0.0
    %392 = vmatprep.subr.mxu0 0.0
    %393 = vmatpush1.msra.mxu0 0.0
    %394 = vmatprep.subr.mxu0 0.0
    %395 = vmatpush1.msra.mxu0 0.0
    %396 = vmatprep.subr.mxu0 0.0
    %397 = vmatpush1.msra.mxu0 0.0
    %398 = vmatprep.subr.mxu0 0.0
    %399 = vmatpush1.msra.mxu0 0.0
    %400 = vmatprep.subr.mxu0 0.0
    %401 = vmatpush1.msra.mxu0 0.0
    %402 = vmatprep.subr.mxu0 0.0
    %403 = vmatpush1.msra.mxu0 0.0
    %404 = vmatprep.subr.mxu0 0.0
    %405 = vmatpush1.msra.mxu0 0.0
    %406 = vmatprep.subr.mxu0 0.0
    %407 = vmatpush1.msra.mxu0 0.0
    %408 = vmatprep.subr.mxu0 0.0
    %409 = vmatpush1.msra.mxu0 0.0
    %410 = vmatprep.subr.mxu0 0.0
    %411 = vmatpush1.msra.mxu0 0.0
    %412 = vmatprep.subr.mxu0 0.0
    %413 = vmatpush1.msra.mxu0 0.0
    %414 = vmatprep.subr.mxu0 0.0
    %415 = vmatpush1.msra.mxu0 0.0
    %416 = vmatprep.subr.mxu0 0.0
    %417 = vmatpush1.msra.mxu0 0.0
    %418 = vmatprep.subr.mxu0 0.0
    %419 = vmatpush1.msra.mxu0 0.0
    %420 = vmatprep.subr.mxu0 0.0
    %421 = vmatpush1.msra.mxu0 0.0
    %422 = vmatprep.subr.mxu0 0.0
    %423 = vmatpush1.msra.mxu0 0.0
    %424 = vmatprep.subr.mxu0 0.0
    %425 = vmatpush1.msra.mxu0 0.0
    %426 = vmatprep.subr.mxu0 0.0
    %427 = vmatpush1.msra.mxu0 0.0
    %428 = vmatprep.subr.mxu0 0.0
    %429 = vmatpush1.msra.mxu0 0.0
    %430 = vmatprep.subr.mxu0 0.0
    %431 = vmatpush1.msra.mxu0 0.0
    %432 = vmatprep.subr.mxu0 0.0
    %433 = vmatpush1.msra.mxu0 0.0
    %434 = vmatprep.mubr.f32.mxu0 0.0
    %435 = vmatmul.mubr.f32.gmra.mrb[0].mxu0 %v368
    %v436 = vpop.f32.mrb[0].mxu0
    %v437 = vadd.f32 0.0, %v436
    %v438 = vpop.f32.mrb[0].mxu0
    %439 = vdwg.mxu0
    %v441 = vrot.slane %v437, 2
    %442 = vrot.lane.b32.xlu0 %v441, 32
    %v443 = vpop.permute.xlu0 %442
    %v445 = vadd.f32 %v122, %v443
    %v446 = vtanh.pop %v445
    %v448 = vrot.slane %v363, 1
    %v449 = vsel %vm133, %v448, 0
    %451 = vmatprep.subr.mxu0 0.0
    %452 = vmatpush1.msra.mxu0 %v125
    %453 = vmatprep.subr.mxu0 0.0
    %454 = vmatpush1.msra.mxu0 %v126
    %455 = vmatprep.subr.mxu0 0.0
    %456 = vmatpush1.msra.mxu0 %v127
    %457 = vmatprep.subr.mxu0 0.0
    %458 = vmatpush1.msra.mxu0 %v128
    %459 = vmatprep.subr.mxu0 0.0
    %460 = vmatpush1.msra.mxu0 0.0
    %461 = vmatprep.subr.mxu0 0.0
    %462 = vmatpush1.msra.mxu0 0.0
    %463 = vmatprep.subr.mxu0 0.0
    %464 = vmatpush1.msra.mxu0 0.0
    %465 = vmatprep.subr.mxu0 0.0
    %466 = vmatpush1.msra.mxu0 0.0
    %467 = vmatprep.subr.mxu0 0.0
    %468 = vmatpush1.msra.mxu0 0.0
    %469 = vmatprep.subr.mxu0 0.0
    %470 = vmatpush1.msra.mxu0 0.0
    %471 = vmatprep.subr.mxu0 0.0
    %472 = vmatpush1.msra.mxu0 0.0
    %473 = vmatprep.subr.mxu0 0.0
    %474 = vmatpush1.msra.mxu0 0.0
    %475 = vmatprep.subr.mxu0 0.0
    %476 = vmatpush1.msra.mxu0 0.0
    %477 = vmatprep.subr.mxu0 0.0
    %478 = vmatpush1.msra.mxu0 0.0
    %479 = vmatprep.subr.mxu0 0.0
    %480 = vmatpush1.msra.mxu0 0.0
    %481 = vmatprep.subr.mxu0 0.0
    %482 = vmatpush1.msra.mxu0 0.0
    %483 = vmatprep.subr.mxu0 0.0
    %484 = vmatpush1.msra.mxu0 0.0
    %485 = vmatprep.subr.mxu0 0.0
    %486 = vmatpush1.msra.mxu0 0.0
    %487 = vmatprep.subr.mxu0 0.0
    %488 = vmatpush1.msra.mxu0 0.0
    %489 = vmatprep.subr.mxu0 0.0
    %490 = vmatpush1.msra.mxu0 0.0
    %491 = vmatprep.subr.mxu0 0.0
    %492 = vmatpush1.msra.mxu0 0.0
    %493 = vmatprep.subr.mxu0 0.0
    %494 = vmatpush1.msra.mxu0 0.0
    %495 = vmatprep.subr.mxu0 0.0
    %496 = vmatpush1.msra.mxu0 0.0
    %497 = vmatprep.subr.mxu0 0.0
    %498 = vmatpush1.msra.mxu0 0.0
    %499 = vmatprep.subr.mxu0 0.0
    %500 = vmatpush1.msra.mxu0 0.0
    %501 = vmatprep.subr.mxu0 0.0
    %502 = vmatpush1.msra.mxu0 0.0
    %503 = vmatprep.subr.mxu0 0.0
    %504 = vmatpush1.msra.mxu0 0.0
    %505 = vmatprep.subr.mxu0 0.0
    %506 = vmatpush1.msra.mxu0 0.0
    %507 = vmatprep.subr.mxu0 0.0
    %508 = vmatpush1.msra.mxu0 0.0
    %509 = vmatprep.subr.mxu0 0.0
    %510 = vmatpush1.msra.mxu0 0.0
    %511 = vmatprep.subr.mxu0 0.0
    %512 = vmatpush1.msra.mxu0 0.0
    %513 = vmatprep.subr.mxu0 0.0
    %514 = vmatpush1.msra.mxu0 0.0
    %515 = vmatprep.mubr.f32.mxu0 0.0
    %516 = vmatmul.mubr.f32.gmra.mrb[0].mxu0 %v449
    %v517 = vpop.f32.mrb[0].mxu0
    %v518 = vadd.f32 0.0, %v517
    %v519 = vpop.f32.mrb[0].mxu0
    %520 = vdwg.mxu0
    %v522 = vrot.slane %v518, 6
    %v524 = vadd.f32 %v122, %v522
    %v525 = vtanh.pop %v524
    %v527 = vrot.slane %v446, 6
    %528 = vrot.lane.b32.xlu0 %v527, 96
    %v529 = vpop.permute.xlu0 %528
    %v530 = vsel %vm133, %v529, 0
    %532 = vmatprep.subr.mxu0 0.0
    %533 = vmatpush1.msra.mxu0 %v129
    %534 = vmatprep.subr.mxu0 0.0
    %535 = vmatpush1.msra.mxu0 %v130
    %536 = vmatprep.subr.mxu0 0.0
    %537 = vmatpush1.msra.mxu0 %v131
    %538 = vmatprep.subr.mxu0 0.0
    %539 = vmatpush1.msra.mxu0 %v132
    %540 = vmatprep.subr.mxu0 0.0
    %541 = vmatpush1.msra.mxu0 0.0
    %542 = vmatprep.subr.mxu0 0.0
    %543 = vmatpush1.msra.mxu0 0.0
    %544 = vmatprep.subr.mxu0 0.0
    %545 = vmatpush1.msra.mxu0 0.0
    %546 = vmatprep.subr.mxu0 0.0
    %547 = vmatpush1.msra.mxu0 0.0
    %548 = vmatprep.subr.mxu0 0.0
    %549 = vmatpush1.msra.mxu0 0.0
    %550 = vmatprep.subr.mxu0 0.0
    %551 = vmatpush1.msra.mxu0 0.0
    %552 = vmatprep.subr.mxu0 0.0
    %553 = vmatpush1.msra.mxu0 0.0
    %554 = vmatprep.subr.mxu0 0.0
    %555 = vmatpush1.msra.mxu0 0.0
    %556 = vmatprep.subr.mxu0 0.0
    %557 = vmatpush1.msra.mxu0 0.0
    %558 = vmatprep.subr.mxu0 0.0
    %559 = vmatpush1.msra.mxu0 0.0
    %560 = vmatprep.subr.mxu0 0.0
    %561 = vmatpush1.msra.mxu0 0.0
    %562 = vmatprep.subr.mxu0 0.0
    %563 = vmatpush1.msra.mxu0 0.0
    %564 = vmatprep.subr.mxu0 0.0
    %565 = vmatpush1.msra.mxu0 0.0
    %566 = vmatprep.subr.mxu0 0.0
    %567 = vmatpush1.msra.mxu0 0.0
    %568 = vmatprep.subr.mxu0 0.0
    %569 = vmatpush1.msra.mxu0 0.0
    %570 = vmatprep.subr.mxu0 0.0
    %571 = vmatpush1.msra.mxu0 0.0
    %572 = vmatprep.subr.mxu0 0.0
    %573 = vmatpush1.msra.mxu0 0.0
    %574 = vmatprep.subr.mxu0 0.0
    %575 = vmatpush1.msra.mxu0 0.0
    %576 = vmatprep.subr.mxu0 0.0
    %577 = vmatpush1.msra.mxu0 0.0
    %578 = vmatprep.subr.mxu0 0.0
    %579 = vmatpush1.msra.mxu0 0.0
    %580 = vmatprep.subr.mxu0 0.0
    %581 = vmatpush1.msra.mxu0 0.0
    %582 = vmatprep.subr.mxu0 0.0
    %583 = vmatpush1.msra.mxu0 0.0
    %584 = vmatprep.subr.mxu0 0.0
    %585 = vmatpush1.msra.mxu0 0.0
    %586 = vmatprep.subr.mxu0 0.0
    %587 = vmatpush1.msra.mxu0 0.0
    %588 = vmatprep.subr.mxu0 0.0
    %589 = vmatpush1.msra.mxu0 0.0
    %590 = vmatprep.subr.mxu0 0.0
    %591 = vmatpush1.msra.mxu0 0.0
    %592 = vmatprep.subr.mxu0 0.0
    %593 = vmatpush1.msra.mxu0 0.0
    %594 = vmatprep.subr.mxu0 0.0
    %595 = vmatpush1.msra.mxu0 0.0
    %596 = vmatprep.mubr.f32.mxu0 0.0
    %597 = vmatmul.mubr.f32.gmra.mrb[0].mxu0 %v530
    %v598 = vpop.f32.mrb[0].mxu0
    %v599 = vadd.f32 0.0, %v598
    %v600 = vpop.f32.mrb[0].mxu0
    %601 = vdwg.mxu0
    %v603 = vrot.slane %v599, 3
    %604 = vrot.lane.b32.xlu0 %v603, 32
    %v605 = vpop.permute.xlu0 %604
    %v607 = vadd.f32 %v122, %v605
    %v608 = vtanh.pop %v607
    %v610 = vrot.slane %v525, 2
    %v611 = vsel %vm133, %v610, 0
    %613 = vmatprep.subr.mxu0 0.0
    %614 = vmatpush1.msra.mxu0 %v125
    %615 = vmatprep.subr.mxu0 0.0
    %616 = vmatpush1.msra.mxu0 %v126
    %617 = vmatprep.subr.mxu0 0.0
    %618 = vmatpush1.msra.mxu0 %v127
    %619 = vmatprep.subr.mxu0 0.0
    %620 = vmatpush1.msra.mxu0 %v128
    %621 = vmatprep.subr.mxu0 0.0
    %622 = vmatpush1.msra.mxu0 0.0
    %623 = vmatprep.subr.mxu0 0.0
    %624 = vmatpush1.msra.mxu0 0.0
    %625 = vmatprep.subr.mxu0 0.0
    %626 = vmatpush1.msra.mxu0 0.0
    %627 = vmatprep.subr.mxu0 0.0
    %628 = vmatpush1.msra.mxu0 0.0
    %629 = vmatprep.subr.mxu0 0.0
    %630 = vmatpush1.msra.mxu0 0.0
    %631 = vmatprep.subr.mxu0 0.0
    %632 = vmatpush1.msra.mxu0 0.0
    %633 = vmatprep.subr.mxu0 0.0
    %634 = vmatpush1.msra.mxu0 0.0
    %635 = vmatprep.subr.mxu0 0.0
    %636 = vmatpush1.msra.mxu0 0.0
    %637 = vmatprep.subr.mxu0 0.0
    %638 = vmatpush1.msra.mxu0 0.0
    %639 = vmatprep.subr.mxu0 0.0
    %640 = vmatpush1.msra.mxu0 0.0
    %641 = vmatprep.subr.mxu0 0.0
    %642 = vmatpush1.msra.mxu0 0.0
    %643 = vmatprep.subr.mxu0 0.0
    %644 = vmatpush1.msra.mxu0 0.0
    %645 = vmatprep.subr.mxu0 0.0
    %646 = vmatpush1.msra.mxu0 0.0
    %647 = vmatprep.subr.mxu0 0.0
    %648 = vmatpush1.msra.mxu0 0.0
    %649 = vmatprep.subr.mxu0 0.0
    %650 = vmatpush1.msra.mxu0 0.0
    %651 = vmatprep.subr.mxu0 0.0
    %652 = vmatpush1.msra.mxu0 0.0
    %653 = vmatprep.subr.mxu0 0.0
    %654 = vmatpush1.msra.mxu0 0.0
    %655 = vmatprep.subr.mxu0 0.0
    %656 = vmatpush1.msra.mxu0 0.0
    %657 = vmatprep.subr.mxu0 0.0
    %658 = vmatpush1.msra.mxu0 0.0
    %659 = vmatprep.subr.mxu0 0.0
    %660 = vmatpush1.msra.mxu0 0.0
    %661 = vmatprep.subr.mxu0 0.0
    %662 = vmatpush1.msra.mxu0 0.0
    %663 = vmatprep.subr.mxu0 0.0
    %664 = vmatpush1.msra.mxu0 0.0
    %665 = vmatprep.subr.mxu0 0.0
    %666 = vmatpush1.msra.mxu0 0.0
    %667 = vmatprep.subr.mxu0 0.0
    %668 = vmatpush1.msra.mxu0 0.0
    %669 = vmatprep.subr.mxu0 0.0
    %670 = vmatpush1.msra.mxu0 0.0
    %671 = vmatprep.subr.mxu0 0.0
    %672 = vmatpush1.msra.mxu0 0.0
    %673 = vmatprep.subr.mxu0 0.0
    %674 = vmatpush1.msra.mxu0 0.0
    %675 = vmatprep.subr.mxu0 0.0
    %676 = vmatpush1.msra.mxu0 0.0
    %677 = vmatprep.mubr.f32.mxu0 0.0
    %678 = vmatmul.mubr.f32.gmra.mrb[0].mxu0 %v611
    %v679 = vpop.f32.mrb[0].mxu0
    %v680 = vadd.f32 0.0, %v679
    %v681 = vpop.f32.mrb[0].mxu0
    %682 = vdwg.mxu0
    %v684 = vrot.slane %v680, 5
    %v686 = vadd.f32 %v122, %v684
    %v687 = vtanh.pop %v686
    %v689 = vrot.slane %v608, 5
    %690 = vrot.lane.b32.xlu0 %v689, 96
    %v691 = vpop.permute.xlu0 %690
    %v692 = vsel %vm133, %v691, 0
    %694 = vmatprep.subr.mxu0 0.0
    %695 = vmatpush1.msra.mxu0 %v129
    %696 = vmatprep.subr.mxu0 0.0
    %697 = vmatpush1.msra.mxu0 %v130
    %698 = vmatprep.subr.mxu0 0.0
    %699 = vmatpush1.msra.mxu0 %v131
    %700 = vmatprep.subr.mxu0 0.0
    %701 = vmatpush1.msra.mxu0 %v132
    %702 = vmatprep.subr.mxu0 0.0
    %703 = vmatpush1.msra.mxu0 0.0
    %704 = vmatprep.subr.mxu0 0.0
    %705 = vmatpush1.msra.mxu0 0.0
    %706 = vmatprep.subr.mxu0 0.0
    %707 = vmatpush1.msra.mxu0 0.0
    %708 = vmatprep.subr.mxu0 0.0
    %709 = vmatpush1.msra.mxu0 0.0
    %710 = vmatprep.subr.mxu0 0.0
    %711 = vmatpush1.msra.mxu0 0.0
    %712 = vmatprep.subr.mxu0 0.0
    %713 = vmatpush1.msra.mxu0 0.0
    %714 = vmatprep.subr.mxu0 0.0
    %715 = vmatpush1.msra.mxu0 0.0
    %716 = vmatprep.subr.mxu0 0.0
    %717 = vmatpush1.msra.mxu0 0.0
    %718 = vmatprep.subr.mxu0 0.0
    %719 = vmatpush1.msra.mxu0 0.0
    %720 = vmatprep.subr.mxu0 0.0
    %721 = vmatpush1.msra.mxu0 0.0
    %722 = vmatprep.subr.mxu0 0.0
    %723 = vmatpush1.msra.mxu0 0.0
    %724 = vmatprep.subr.mxu0 0.0
    %725 = vmatpush1.msra.mxu0 0.0
    %726 = vmatprep.subr.mxu0 0.0
    %727 = vmatpush1.msra.mxu0 0.0
    %728 = vmatprep.subr.mxu0 0.0
    %729 = vmatpush1.msra.mxu0 0.0
    %730 = vmatprep.subr.mxu0 0.0
    %731 = vmatpush1.msra.mxu0 0.0
    %732 = vmatprep.subr.mxu0 0.0
    %733 = vmatpush1.msra.mxu0 0.0
    %734 = vmatprep.subr.mxu0 0.0
    %735 = vmatpush1.msra.mxu0 0.0
    %736 = vmatprep.subr.mxu0 0.0
    %737 = vmatpush1.msra.mxu0 0.0
    %738 = vmatprep.subr.mxu0 0.0
    %739 = vmatpush1.msra.mxu0 0.0
    %740 = vmatprep.subr.mxu0 0.0
    %741 = vmatpush1.msra.mxu0 0.0
    %742 = vmatprep.subr.mxu0 0.0
    %743 = vmatpush1.msra.mxu0 0.0
    %744 = vmatprep.subr.mxu0 0.0
    %745 = vmatpush1.msra.mxu0 0.0
    %746 = vmatprep.subr.mxu0 0.0
    %747 = vmatpush1.msra.mxu0 0.0
    %748 = vmatprep.subr.mxu0 0.0
    %749 = vmatpush1.msra.mxu0 0.0
    %750 = vmatprep.subr.mxu0 0.0
    %751 = vmatpush1.msra.mxu0 0.0
    %752 = vmatprep.subr.mxu0 0.0
    %753 = vmatpush1.msra.mxu0 0.0
    %754 = vmatprep.subr.mxu0 0.0
    %755 = vmatpush1.msra.mxu0 0.0
    %756 = vmatprep.subr.mxu0 0.0
    %757 = vmatpush1.msra.mxu0 0.0
    %758 = vmatprep.mubr.f32.mxu0 0.0
    %759 = vmatmul.mubr.f32.gmra.mrb[0].mxu0 %v692
    %v760 = vpop.f32.mrb[0].mxu0
    %v761 = vadd.f32 0.0, %v760
    %v762 = vpop.f32.mrb[0].mxu0
    %763 = vdwg.mxu0
    %v765 = vrot.slane %v761, 4
    %766 = vrot.lane.b32.xlu0 %v765, 32
    %v767 = vpop.permute.xlu0 %766
    %v769 = vadd.f32 %v122, %v767
    %v770 = vtanh.pop %v769
    %v772 = vrot.slane %v687, 3
    %v773 = vsel %vm133, %v772, 0
    %775 = vmatprep.subr.mxu0 0.0
    %776 = vmatpush1.msra.mxu0 %v125
    %777 = vmatprep.subr.mxu0 0.0
    %778 = vmatpush1.msra.mxu0 %v126
    %779 = vmatprep.subr.mxu0 0.0
    %780 = vmatpush1.msra.mxu0 %v127
    %781 = vmatprep.subr.mxu0 0.0
    %782 = vmatpush1.msra.mxu0 %v128
    %783 = vmatprep.subr.mxu0 0.0
    %784 = vmatpush1.msra.mxu0 0.0
    %785 = vmatprep.subr.mxu0 0.0
    %786 = vmatpush1.msra.mxu0 0.0
    %787 = vmatprep.subr.mxu0 0.0
    %788 = vmatpush1.msra.mxu0 0.0
    %789 = vmatprep.subr.mxu0 0.0
    %790 = vmatpush1.msra.mxu0 0.0
    %791 = vmatprep.subr.mxu0 0.0
    %792 = vmatpush1.msra.mxu0 0.0
    %793 = vmatprep.subr.mxu0 0.0
    %794 = vmatpush1.msra.mxu0 0.0
    %795 = vmatprep.subr.mxu0 0.0
    %796 = vmatpush1.msra.mxu0 0.0
    %797 = vmatprep.subr.mxu0 0.0
    %798 = vmatpush1.msra.mxu0 0.0
    %799 = vmatprep.subr.mxu0 0.0
    %800 = vmatpush1.msra.mxu0 0.0
    %801 = vmatprep.subr.mxu0 0.0
    %802 = vmatpush1.msra.mxu0 0.0
    %803 = vmatprep.subr.mxu0 0.0
    %804 = vmatpush1.msra.mxu0 0.0
    %805 = vmatprep.subr.mxu0 0.0
    %806 = vmatpush1.msra.mxu0 0.0
    %807 = vmatprep.subr.mxu0 0.0
    %808 = vmatpush1.msra.mxu0 0.0
    %809 = vmatprep.subr.mxu0 0.0
    %810 = vmatpush1.msra.mxu0 0.0
    %811 = vmatprep.subr.mxu0 0.0
    %812 = vmatpush1.msra.mxu0 0.0
    %813 = vmatprep.subr.mxu0 0.0
    %814 = vmatpush1.msra.mxu0 0.0
    %815 = vmatprep.subr.mxu0 0.0
    %816 = vmatpush1.msra.mxu0 0.0
    %817 = vmatprep.subr.mxu0 0.0
    %818 = vmatpush1.msra.mxu0 0.0
    %819 = vmatprep.subr.mxu0 0.0
    %820 = vmatpush1.msra.mxu0 0.0
    %821 = vmatprep.subr.mxu0 0.0
    %822 = vmatpush1.msra.mxu0 0.0
    %823 = vmatprep.subr.mxu0 0.0
    %824 = vmatpush1.msra.mxu0 0.0
    %825 = vmatprep.subr.mxu0 0.0
    %826 = vmatpush1.msra.mxu0 0.0
    %827 = vmatprep.subr.mxu0 0.0
    %828 = vmatpush1.msra.mxu0 0.0
    %829 = vmatprep.subr.mxu0 0.0
    %830 = vmatpush1.msra.mxu0 0.0
    %831 = vmatprep.subr.mxu0 0.0
    %832 = vmatpush1.msra.mxu0 0.0
    %833 = vmatprep.subr.mxu0 0.0
    %834 = vmatpush1.msra.mxu0 0.0
    %835 = vmatprep.subr.mxu0 0.0
    %836 = vmatpush1.msra.mxu0 0.0
    %837 = vmatprep.subr.mxu0 0.0
    %838 = vmatpush1.msra.mxu0 0.0
    %839 = vmatprep.mubr.f32.mxu0 0.0
    %840 = vmatmul.mubr.f32.gmra.mrb[0].mxu0 %v773
    %v841 = vpop.f32.mrb[0].mxu0
    %v842 = vadd.f32 0.0, %v841
    %v843 = vpop.f32.mrb[0].mxu0
    %844 = vdwg.mxu0
    %v846 = vrot.slane %v842, 4
    %v848 = vadd.f32 %v122, %v846
    %v849 = vtanh.pop %v848
    %v851 = vrot.slane %v770, 4
    %852 = vrot.lane.b32.xlu0 %v851, 96
    %v853 = vpop.permute.xlu0 %852
    %v854 = vsel %vm133, %v853, 0
    %856 = vmatprep.subr.mxu0 0.0
    %857 = vmatpush1.msra.mxu0 %v129
    %858 = vmatprep.subr.mxu0 0.0
    %859 = vmatpush1.msra.mxu0 %v130
    %860 = vmatprep.subr.mxu0 0.0
    %861 = vmatpush1.msra.mxu0 %v131
    %862 = vmatprep.subr.mxu0 0.0
    %863 = vmatpush1.msra.mxu0 %v132
    %864 = vmatprep.subr.mxu0 0.0
    %865 = vmatpush1.msra.mxu0 0.0
    %866 = vmatprep.subr.mxu0 0.0
    %867 = vmatpush1.msra.mxu0 0.0
    %868 = vmatprep.subr.mxu0 0.0
    %869 = vmatpush1.msra.mxu0 0.0
    %870 = vmatprep.subr.mxu0 0.0
    %871 = vmatpush1.msra.mxu0 0.0
    %872 = vmatprep.subr.mxu0 0.0
    %873 = vmatpush1.msra.mxu0 0.0
    %874 = vmatprep.subr.mxu0 0.0
    %875 = vmatpush1.msra.mxu0 0.0
    %876 = vmatprep.subr.mxu0 0.0
    %877 = vmatpush1.msra.mxu0 0.0
    %878 = vmatprep.subr.mxu0 0.0
    %879 = vmatpush1.msra.mxu0 0.0
    %880 = vmatprep.subr.mxu0 0.0
    %881 = vmatpush1.msra.mxu0 0.0
    %882 = vmatprep.subr.mxu0 0.0
    %883 = vmatpush1.msra.mxu0 0.0
    %884 = vmatprep.subr.mxu0 0.0
    %885 = vmatpush1.msra.mxu0 0.0
    %886 = vmatprep.subr.mxu0 0.0
    %887 = vmatpush1.msra.mxu0 0.0
    %888 = vmatprep.subr.mxu0 0.0
    %889 = vmatpush1.msra.mxu0 0.0
    %890 = vmatprep.subr.mxu0 0.0
    %891 = vmatpush1.msra.mxu0 0.0
    %892 = vmatprep.subr.mxu0 0.0
    %893 = vmatpush1.msra.mxu0 0.0
    %894 = vmatprep.subr.mxu0 0.0
    %895 = vmatpush1.msra.mxu0 0.0
    %896 = vmatprep.subr.mxu0 0.0
    %897 = vmatpush1.msra.mxu0 0.0
    %898 = vmatprep.subr.mxu0 0.0
    %899 = vmatpush1.msra.mxu0 0.0
    %900 = vmatprep.subr.mxu0 0.0
    %901 = vmatpush1.msra.mxu0 0.0
    %902 = vmatprep.subr.mxu0 0.0
    %903 = vmatpush1.msra.mxu0 0.0
    %904 = vmatprep.subr.mxu0 0.0
    %905 = vmatpush1.msra.mxu0 0.0
    %906 = vmatprep.subr.mxu0 0.0
    %907 = vmatpush1.msra.mxu0 0.0
    %908 = vmatprep.subr.mxu0 0.0
    %909 = vmatpush1.msra.mxu0 0.0
    %910 = vmatprep.subr.mxu0 0.0
    %911 = vmatpush1.msra.mxu0 0.0
    %912 = vmatprep.subr.mxu0 0.0
    %913 = vmatpush1.msra.mxu0 0.0
    %914 = vmatprep.subr.mxu0 0.0
    %915 = vmatpush1.msra.mxu0 0.0
    %916 = vmatprep.subr.mxu0 0.0
    %917 = vmatpush1.msra.mxu0 0.0
    %918 = vmatprep.subr.mxu0 0.0
    %919 = vmatpush1.msra.mxu0 0.0
    %920 = vmatprep.mubr.f32.mxu0 0.0
    %921 = vmatmul.mubr.f32.gmra.mrb[0].mxu0 %v854
    %v922 = vpop.f32.mrb[0].mxu0
    %v923 = vadd.f32 0.0, %v922
    %v924 = vpop.f32.mrb[0].mxu0
    %925 = vdwg.mxu0
    %v927 = vrot.slane %v923, 5
    %928 = vrot.lane.b32.xlu0 %v927, 32
    %v929 = vpop.permute.xlu0 %928
    %v931 = vadd.f32 %v122, %v929
    %v932 = vtanh.pop %v931
    %v934 = vrot.slane %v849, 4
    %v935 = vsel %vm133, %v934, 0
    %937 = vmatprep.subr.mxu0 0.0
    %938 = vmatpush1.msra.mxu0 %v125
    %939 = vmatprep.subr.mxu0 0.0
    %940 = vmatpush1.msra.mxu0 %v126
    %941 = vmatprep.subr.mxu0 0.0
    %942 = vmatpush1.msra.mxu0 %v127
    %943 = vmatprep.subr.mxu0 0.0
    %944 = vmatpush1.msra.mxu0 %v128
    %945 = vmatprep.subr.mxu0 0.0
    %946 = vmatpush1.msra.mxu0 0.0
    %947 = vmatprep.subr.mxu0 0.0
    %948 = vmatpush1.msra.mxu0 0.0
    %949 = vmatprep.subr.mxu0 0.0
    %950 = vmatpush1.msra.mxu0 0.0
    %951 = vmatprep.subr.mxu0 0.0
    %952 = vmatpush1.msra.mxu0 0.0
    %953 = vmatprep.subr.mxu0 0.0
    %954 = vmatpush1.msra.mxu0 0.0
    %955 = vmatprep.subr.mxu0 0.0
    %956 = vmatpush1.msra.mxu0 0.0
    %957 = vmatprep.subr.mxu0 0.0
    %958 = vmatpush1.msra.mxu0 0.0
    %959 = vmatprep.subr.mxu0 0.0
    %960 = vmatpush1.msra.mxu0 0.0
    %961 = vmatprep.subr.mxu0 0.0
    %962 = vmatpush1.msra.mxu0 0.0
    %963 = vmatprep.subr.mxu0 0.0
    %964 = vmatpush1.msra.mxu0 0.0
    %965 = vmatprep.subr.mxu0 0.0
    %966 = vmatpush1.msra.mxu0 0.0
    %967 = vmatprep.subr.mxu0 0.0
    %968 = vmatpush1.msra.mxu0 0.0
    %969 = vmatprep.subr.mxu0 0.0
    %970 = vmatpush1.msra.mxu0 0.0
    %971 = vmatprep.subr.mxu0 0.0
    %972 = vmatpush1.msra.mxu0 0.0
    %973 = vmatprep.subr.mxu0 0.0
    %974 = vmatpush1.msra.mxu0 0.0
    %975 = vmatprep.subr.mxu0 0.0
    %976 = vmatpush1.msra.mxu0 0.0
    %977 = vmatprep.subr.mxu0 0.0
    %978 = vmatpush1.msra.mxu0 0.0
    %979 = vmatprep.subr.mxu0 0.0
    %980 = vmatpush1.msra.mxu0 0.0
    %981 = vmatprep.subr.mxu0 0.0
    %982 = vmatpush1.msra.mxu0 0.0
    %983 = vmatprep.subr.mxu0 0.0
    %984 = vmatpush1.msra.mxu0 0.0
    %985 = vmatprep.subr.mxu0 0.0
    %986 = vmatpush1.msra.mxu0 0.0
    %987 = vmatprep.subr.mxu0 0.0
    %988 = vmatpush1.msra.mxu0 0.0
    %989 = vmatprep.subr.mxu0 0.0
    %990 = vmatpush1.msra.mxu0 0.0
    %991 = vmatprep.subr.mxu0 0.0
    %992 = vmatpush1.msra.mxu0 0.0
    %993 = vmatprep.subr.mxu0 0.0
    %994 = vmatpush1.msra.mxu0 0.0
    %995 = vmatprep.subr.mxu0 0.0
    %996 = vmatpush1.msra.mxu0 0.0
    %997 = vmatprep.subr.mxu0 0.0
    %998 = vmatpush1.msra.mxu0 0.0
    %999 = vmatprep.subr.mxu0 0.0
    %1000 = vmatpush1.msra.mxu0 0.0
    %1001 = vmatprep.mubr.f32.mxu0 0.0
    %1002 = vmatmul.mubr.f32.gmra.mrb[0].mxu0 %v935
    %v1003 = vpop.f32.mrb[0].mxu0
    %v1004 = vadd.f32 0.0, %v1003
    %v1005 = vpop.f32.mrb[0].mxu0
    %1006 = vdwg.mxu0
    %v1008 = vrot.slane %v1004, 3
    %v1010 = vadd.f32 %v122, %v1008
    %v1011 = vtanh.pop %v1010
    %v1013 = vrot.slane %v932, 3
    %1014 = vrot.lane.b32.xlu0 %v1013, 96
    %v1015 = vpop.permute.xlu0 %1014
    %v1016 = vsel %vm133, %v1015, 0
    %1018 = vmatprep.subr.mxu0 0.0
    %1019 = vmatpush1.msra.mxu0 %v129
    %1020 = vmatprep.subr.mxu0 0.0
    %1021 = vmatpush1.msra.mxu0 %v130
    %1022 = vmatprep.subr.mxu0 0.0
    %1023 = vmatpush1.msra.mxu0 %v131
    %1024 = vmatprep.subr.mxu0 0.0
    %1025 = vmatpush1.msra.mxu0 %v132
    %1026 = vmatprep.subr.mxu0 0.0
    %1027 = vmatpush1.msra.mxu0 0.0
    %1028 = vmatprep.subr.mxu0 0.0
    %1029 = vmatpush1.msra.mxu0 0.0
    %1030 = vmatprep.subr.mxu0 0.0
    %1031 = vmatpush1.msra.mxu0 0.0
    %1032 = vmatprep.subr.mxu0 0.0
    %1033 = vmatpush1.msra.mxu0 0.0
    %1034 = vmatprep.subr.mxu0 0.0
    %1035 = vmatpush1.msra.mxu0 0.0
    %1036 = vmatprep.subr.mxu0 0.0
    %1037 = vmatpush1.msra.mxu0 0.0
    %1038 = vmatprep.subr.mxu0 0.0
    %1039 = vmatpush1.msra.mxu0 0.0
    %1040 = vmatprep.subr.mxu0 0.0
    %1041 = vmatpush1.msra.mxu0 0.0
    %1042 = vmatprep.subr.mxu0 0.0
    %1043 = vmatpush1.msra.mxu0 0.0
    %1044 = vmatprep.subr.mxu0 0.0
    %1045 = vmatpush1.msra.mxu0 0.0
    %1046 = vmatprep.subr.mxu0 0.0
    %1047 = vmatpush1.msra.mxu0 0.0
    %1048 = vmatprep.subr.mxu0 0.0
    %1049 = vmatpush1.msra.mxu0 0.0
    %1050 = vmatprep.subr.mxu0 0.0
    %1051 = vmatpush1.msra.mxu0 0.0
    %1052 = vmatprep.subr.mxu0 0.0
    %1053 = vmatpush1.msra.mxu0 0.0
    %1054 = vmatprep.subr.mxu0 0.0
    %1055 = vmatpush1.msra.mxu0 0.0
    %1056 = vmatprep.subr.mxu0 0.0
    %1057 = vmatpush1.msra.mxu0 0.0
    %1058 = vmatprep.subr.mxu0 0.0
    %1059 = vmatpush1.msra.mxu0 0.0
    %1060 = vmatprep.subr.mxu0 0.0
    %1061 = vmatpush1.msra.mxu0 0.0
    %1062 = vmatprep.subr.mxu0 0.0
    %1063 = vmatpush1.msra.mxu0 0.0
    %1064 = vmatprep.subr.mxu0 0.0
    %1065 = vmatpush1.msra.mxu0 0.0
    %1066 = vmatprep.subr.mxu0 0.0
    %1067 = vmatpush1.msra.mxu0 0.0
    %1068 = vmatprep.subr.mxu0 0.0
    %1069 = vmatpush1.msra.mxu0 0.0
    %1070 = vmatprep.subr.mxu0 0.0
    %1071 = vmatpush1.msra.mxu0 0.0
    %1072 = vmatprep.subr.mxu0 0.0
    %1073 = vmatpush1.msra.mxu0 0.0
    %1074 = vmatprep.subr.mxu0 0.0
    %1075 = vmatpush1.msra.mxu0 0.0
    %1076 = vmatprep.subr.mxu0 0.0
    %1077 = vmatpush1.msra.mxu0 0.0
    %1078 = vmatprep.subr.mxu0 0.0
    %1079 = vmatpush1.msra.mxu0 0.0
    %1080 = vmatprep.subr.mxu0 0.0
    %1081 = vmatpush1.msra.mxu0 0.0
    %1082 = vmatprep.mubr.f32.mxu0 0.0
    %1083 = vmatmul.mubr.f32.gmra.mrb[0].mxu0 %v1016
    %v1084 = vpop.f32.mrb[0].mxu0
    %v1085 = vadd.f32 0.0, %v1084
    %v1086 = vpop.f32.mrb[0].mxu0
    %1087 = vdwg.mxu0
    %v1089 = vrot.slane %v1085, 6
    %1090 = vrot.lane.b32.xlu0 %v1089, 32
    %v1091 = vpop.permute.xlu0 %1090
    %v1093 = vadd.f32 %v122, %v1091
    %v1094 = vtanh.pop %v1093
    %v1096 = vrot.slane %v1011, 5
    %v1097 = vsel %vm133, %v1096, 0
    %1099 = vmatprep.subr.mxu0 0.0
    %1100 = vmatpush1.msra.mxu0 %v125
    %1101 = vmatprep.subr.mxu0 0.0
    %1102 = vmatpush1.msra.mxu0 %v126
    %1103 = vmatprep.subr.mxu0 0.0
    %1104 = vmatpush1.msra.mxu0 %v127
    %1105 = vmatprep.subr.mxu0 0.0
    %1106 = vmatpush1.msra.mxu0 %v128
    %1107 = vmatprep.subr.mxu0 0.0
    %1108 = vmatpush1.msra.mxu0 0.0
    %1109 = vmatprep.subr.mxu0 0.0
    %1110 = vmatpush1.msra.mxu0 0.0
    %1111 = vmatprep.subr.mxu0 0.0
    %1112 = vmatpush1.msra.mxu0 0.0
    %1113 = vmatprep.subr.mxu0 0.0
    %1114 = vmatpush1.msra.mxu0 0.0
    %1115 = vmatprep.subr.mxu0 0.0
    %1116 = vmatpush1.msra.mxu0 0.0
    %1117 = vmatprep.subr.mxu0 0.0
    %1118 = vmatpush1.msra.mxu0 0.0
    %1119 = vmatprep.subr.mxu0 0.0
    %1120 = vmatpush1.msra.mxu0 0.0
    %1121 = vmatprep.subr.mxu0 0.0
    %1122 = vmatpush1.msra.mxu0 0.0
    %1123 = vmatprep.subr.mxu0 0.0
    %1124 = vmatpush1.msra.mxu0 0.0
    %1125 = vmatprep.subr.mxu0 0.0
    %1126 = vmatpush1.msra.mxu0 0.0
    %1127 = vmatprep.subr.mxu0 0.0
    %1128 = vmatpush1.msra.mxu0 0.0
    %1129 = vmatprep.subr.mxu0 0.0
    %1130 = vmatpush1.msra.mxu0 0.0
    %1131 = vmatprep.subr.mxu0 0.0
    %1132 = vmatpush1.msra.mxu0 0.0
    %1133 = vmatprep.subr.mxu0 0.0
    %1134 = vmatpush1.msra.mxu0 0.0
    %1135 = vmatprep.subr.mxu0 0.0
    %1136 = vmatpush1.msra.mxu0 0.0
    %1137 = vmatprep.subr.mxu0 0.0
    %1138 = vmatpush1.msra.mxu0 0.0
    %1139 = vmatprep.subr.mxu0 0.0
    %1140 = vmatpush1.msra.mxu0 0.0
    %1141 = vmatprep.subr.mxu0 0.0
    %1142 = vmatpush1.msra.mxu0 0.0
    %1143 = vmatprep.subr.mxu0 0.0
    %1144 = vmatpush1.msra.mxu0 0.0
    %1145 = vmatprep.subr.mxu0 0.0
    %1146 = vmatpush1.msra.mxu0 0.0
    %1147 = vmatprep.subr.mxu0 0.0
    %1148 = vmatpush1.msra.mxu0 0.0
    %1149 = vmatprep.subr.mxu0 0.0
    %1150 = vmatpush1.msra.mxu0 0.0
    %1151 = vmatprep.subr.mxu0 0.0
    %1152 = vmatpush1.msra.mxu0 0.0
    %1153 = vmatprep.subr.mxu0 0.0
    %1154 = vmatpush1.msra.mxu0 0.0
    %1155 = vmatprep.subr.mxu0 0.0
    %1156 = vmatpush1.msra.mxu0 0.0
    %1157 = vmatprep.subr.mxu0 0.0
    %1158 = vmatpush1.msra.mxu0 0.0
    %1159 = vmatprep.subr.mxu0 0.0
    %1160 = vmatpush1.msra.mxu0 0.0
    %1161 = vmatprep.subr.mxu0 0.0
    %1162 = vmatpush1.msra.mxu0 0.0
    %1163 = vmatprep.mubr.f32.mxu0 0.0
    %1164 = vmatmul.mubr.f32.gmra.mrb[0].mxu0 %v1097
    %v1165 = vpop.f32.mrb[0].mxu0
    %v1166 = vadd.f32 0.0, %v1165
    %v1167 = vpop.f32.mrb[0].mxu0
    %1168 = vdwg.mxu0
    %v1170 = vrot.slane %v1166, 2
    %v1172 = vadd.f32 %v122, %v1170
    %v1173 = vtanh.pop %v1172
    %v1175 = vrot.slane %v1094, 2
    %1176 = vrot.lane.b32.xlu0 %v1175, 96
    %v1177 = vpop.permute.xlu0 %1176
    %v1178 = vsel %vm133, %v1177, 0
    %1180 = vmatprep.subr.mxu0 0.0
    %1181 = vmatpush1.msra.mxu0 %v129
    %1182 = vmatprep.subr.mxu0 0.0
    %1183 = vmatpush1.msra.mxu0 %v130
    %1184 = vmatprep.subr.mxu0 0.0
    %1185 = vmatpush1.msra.mxu0 %v131
    %1186 = vmatprep.subr.mxu0 0.0
    %1187 = vmatpush1.msra.mxu0 %v132
    %1188 = vmatprep.subr.mxu0 0.0
    %1189 = vmatpush1.msra.mxu0 0.0
    %1190 = vmatprep.subr.mxu0 0.0
    %1191 = vmatpush1.msra.mxu0 0.0
    %1192 = vmatprep.subr.mxu0 0.0
    %1193 = vmatpush1.msra.mxu0 0.0
    %1194 = vmatprep.subr.mxu0 0.0
    %1195 = vmatpush1.msra.mxu0 0.0
    %1196 = vmatprep.subr.mxu0 0.0
    %1197 = vmatpush1.msra.mxu0 0.0
    %1198 = vmatprep.subr.mxu0 0.0
    %1199 = vmatpush1.msra.mxu0 0.0
    %1200 = vmatprep.subr.mxu0 0.0
    %1201 = vmatpush1.msra.mxu0 0.0
    %1202 = vmatprep.subr.mxu0 0.0
    %1203 = vmatpush1.msra.mxu0 0.0
    %1204 = vmatprep.subr.mxu0 0.0
    %1205 = vmatpush1.msra.mxu0 0.0
    %1206 = vmatprep.subr.mxu0 0.0
    %1207 = vmatpush1.msra.mxu0 0.0
    %1208 = vmatprep.subr.mxu0 0.0
    %1209 = vmatpush1.msra.mxu0 0.0
    %1210 = vmatprep.subr.mxu0 0.0
    %1211 = vmatpush1.msra.mxu0 0.0
    %1212 = vmatprep.subr.mxu0 0.0
    %1213 = vmatpush1.msra.mxu0 0.0
    %1214 = vmatprep.subr.mxu0 0.0
    %1215 = vmatpush1.msra.mxu0 0.0
    %1216 = vmatprep.subr.mxu0 0.0
    %1217 = vmatpush1.msra.mxu0 0.0
    %1218 = vmatprep.subr.mxu0 0.0
    %1219 = vmatpush1.msra.mxu0 0.0
    %1220 = vmatprep.subr.mxu0 0.0
    %1221 = vmatpush1.msra.mxu0 0.0
    %1222 = vmatprep.subr.mxu0 0.0
    %1223 = vmatpush1.msra.mxu0 0.0
    %1224 = vmatprep.subr.mxu0 0.0
    %1225 = vmatpush1.msra.mxu0 0.0
    %1226 = vmatprep.subr.mxu0 0.0
    %1227 = vmatpush1.msra.mxu0 0.0
    %1228 = vmatprep.subr.mxu0 0.0
    %1229 = vmatpush1.msra.mxu0 0.0
    %1230 = vmatprep.subr.mxu0 0.0
    %1231 = vmatpush1.msra.mxu0 0.0
    %1232 = vmatprep.subr.mxu0 0.0
    %1233 = vmatpush1.msra.mxu0 0.0
    %1234 = vmatprep.subr.mxu0 0.0
    %1235 = vmatpush1.msra.mxu0 0.0
    %1236 = vmatprep.subr.mxu0 0.0
    %1237 = vmatpush1.msra.mxu0 0.0
    %1238 = vmatprep.subr.mxu0 0.0
    %1239 = vmatpush1.msra.mxu0 0.0
    %1240 = vmatprep.subr.mxu0 0.0
    %1241 = vmatpush1.msra.mxu0 0.0
    %1242 = vmatprep.subr.mxu0 0.0
    %1243 = vmatpush1.msra.mxu0 0.0
    %1244 = vmatprep.mubr.f32.mxu0 0.0
    %1245 = vmatmul.mubr.f32.gmra.mrb[0].mxu0 %v1178
    %v1246 = vpop.f32.mrb[0].mxu0
    %v1247 = vadd.f32 0.0, %v1246
    %v1248 = vpop.f32.mrb[0].mxu0
    %1249 = vdwg.mxu0
    %v1251 = vrot.slane %v1247, 7
    %1252 = vrot.lane.b32.xlu0 %v1251, 32
    %v1253 = vpop.permute.xlu0 %1252
    %v1255 = vadd.f32 %v122, %v1253
    %v1256 = vtanh.pop %v1255
    %v1258 = vrot.slane %v1173, 6
    %v1259 = vsel %vm133, %v1258, 0
    %1261 = vmatprep.subr.mxu0 0.0
    %1262 = vmatpush1.msra.mxu0 %v125
    %1263 = vmatprep.subr.mxu0 0.0
    %1264 = vmatpush1.msra.mxu0 %v126
    %1265 = vmatprep.subr.mxu0 0.0
    %1266 = vmatpush1.msra.mxu0 %v127
    %1267 = vmatprep.subr.mxu0 0.0
    %1268 = vmatpush1.msra.mxu0 %v128
    %1269 = vmatprep.subr.mxu0 0.0
    %1270 = vmatpush1.msra.mxu0 0.0
    %1271 = vmatprep.subr.mxu0 0.0
    %1272 = vmatpush1.msra.mxu0 0.0
    %1273 = vmatprep.subr.mxu0 0.0
    %1274 = vmatpush1.msra.mxu0 0.0
    %1275 = vmatprep.subr.mxu0 0.0
    %1276 = vmatpush1.msra.mxu0 0.0
    %1277 = vmatprep.subr.mxu0 0.0
    %1278 = vmatpush1.msra.mxu0 0.0
    %1279 = vmatprep.subr.mxu0 0.0
    %1280 = vmatpush1.msra.mxu0 0.0
    %1281 = vmatprep.subr.mxu0 0.0
    %1282 = vmatpush1.msra.mxu0 0.0
    %1283 = vmatprep.subr.mxu0 0.0
    %1284 = vmatpush1.msra.mxu0 0.0
    %1285 = vmatprep.subr.mxu0 0.0
    %1286 = vmatpush1.msra.mxu0 0.0
    %1287 = vmatprep.subr.mxu0 0.0
    %1288 = vmatpush1.msra.mxu0 0.0
    %1289 = vmatprep.subr.mxu0 0.0
    %1290 = vmatpush1.msra.mxu0 0.0
    %1291 = vmatprep.subr.mxu0 0.0
    %1292 = vmatpush1.msra.mxu0 0.0
    %1293 = vmatprep.subr.mxu0 0.0
    %1294 = vmatpush1.msra.mxu0 0.0
    %1295 = vmatprep.subr.mxu0 0.0
    %1296 = vmatpush1.msra.mxu0 0.0
    %1297 = vmatprep.subr.mxu0 0.0
    %1298 = vmatpush1.msra.mxu0 0.0
    %1299 = vmatprep.subr.mxu0 0.0
    %1300 = vmatpush1.msra.mxu0 0.0
    %1301 = vmatprep.subr.mxu0 0.0
    %1302 = vmatpush1.msra.mxu0 0.0
    %1303 = vmatprep.subr.mxu0 0.0
    %1304 = vmatpush1.msra.mxu0 0.0
    %1305 = vmatprep.subr.mxu0 0.0
    %1306 = vmatpush1.msra.mxu0 0.0
    %1307 = vmatprep.subr.mxu0 0.0
    %1308 = vmatpush1.msra.mxu0 0.0
    %1309 = vmatprep.subr.mxu0 0.0
    %1310 = vmatpush1.msra.mxu0 0.0
    %1311 = vmatprep.subr.mxu0 0.0
    %1312 = vmatpush1.msra.mxu0 0.0
    %1313 = vmatprep.subr.mxu0 0.0
    %1314 = vmatpush1.msra.mxu0 0.0
    %1315 = vmatprep.subr.mxu0 0.0
    %1316 = vmatpush1.msra.mxu0 0.0
    %1317 = vmatprep.subr.mxu0 0.0
    %1318 = vmatpush1.msra.mxu0 0.0
    %1319 = vmatprep.subr.mxu0 0.0
    %1320 = vmatpush1.msra.mxu0 0.0
    %1321 = vmatprep.subr.mxu0 0.0
    %1322 = vmatpush1.msra.mxu0 0.0
    %1323 = vmatprep.subr.mxu0 0.0
    %1324 = vmatpush1.msra.mxu0 0.0
    %1325 = vmatprep.mubr.f32.mxu0 0.0
    %1326 = vmatmul.mubr.f32.gmra.mrb[0].mxu0 %v1259
    %v1327 = vpop.f32.mrb[0].mxu0
    %v1328 = vadd.f32 0.0, %v1327
    %v1329 = vpop.f32.mrb[0].mxu0
    %1330 = vdwg.mxu0
    %v1332 = vrot.slane %v1328, 1
    %v1334 = vadd.f32 %v122, %v1332
    %v1335 = vtanh.pop %v1334
    %v1337 = vrot.slane %v1256, 1
    %1338 = vrot.lane.b32.xlu0 %v1337, 96
    %v1339 = vpop.permute.xlu0 %1338
    %v1340 = vsel %vm133, %v1339, 0
    %1342 = vmatprep.subr.mxu0 0.0
    %1343 = vmatpush1.msra.mxu0 %v129
    %1344 = vmatprep.subr.mxu0 0.0
    %1345 = vmatpush1.msra.mxu0 %v130
    %1346 = vmatprep.subr.mxu0 0.0
    %1347 = vmatpush1.msra.mxu0 %v131
    %1348 = vmatprep.subr.mxu0 0.0
    %1349 = vmatpush1.msra.mxu0 %v132
    %1350 = vmatprep.subr.mxu0 0.0
    %1351 = vmatpush1.msra.mxu0 0.0
    %1352 = vmatprep.subr.mxu0 0.0
    %1353 = vmatpush1.msra.mxu0 0.0
    %1354 = vmatprep.subr.mxu0 0.0
    %1355 = vmatpush1.msra.mxu0 0.0
    %1356 = vmatprep.subr.mxu0 0.0
    %1357 = vmatpush1.msra.mxu0 0.0
    %1358 = vmatprep.subr.mxu0 0.0
    %1359 = vmatpush1.msra.mxu0 0.0
    %1360 = vmatprep.subr.mxu0 0.0
    %1361 = vmatpush1.msra.mxu0 0.0
    %1362 = vmatprep.subr.mxu0 0.0
    %1363 = vmatpush1.msra.mxu0 0.0
    %1364 = vmatprep.subr.mxu0 0.0
    %1365 = vmatpush1.msra.mxu0 0.0
    %1366 = vmatprep.subr.mxu0 0.0
    %1367 = vmatpush1.msra.mxu0 0.0
    %1368 = vmatprep.subr.mxu0 0.0
    %1369 = vmatpush1.msra.mxu0 0.0
    %1370 = vmatprep.subr.mxu0 0.0
    %1371 = vmatpush1.msra.mxu0 0.0
    %1372 = vmatprep.subr.mxu0 0.0
    %1373 = vmatpush1.msra.mxu0 0.0
    %1374 = vmatprep.subr.mxu0 0.0
    %1375 = vmatpush1.msra.mxu0 0.0
    %1376 = vmatprep.subr.mxu0 0.0
    %1377 = vmatpush1.msra.mxu0 0.0
    %1378 = vmatprep.subr.mxu0 0.0
    %1379 = vmatpush1.msra.mxu0 0.0
    %1380 = vmatprep.subr.mxu0 0.0
    %1381 = vmatpush1.msra.mxu0 0.0
    %1382 = vmatprep.subr.mxu0 0.0
    %1383 = vmatpush1.msra.mxu0 0.0
    %1384 = vmatprep.subr.mxu0 0.0
    %1385 = vmatpush1.msra.mxu0 0.0
    %1386 = vmatprep.subr.mxu0 0.0
    %1387 = vmatpush1.msra.mxu0 0.0
    %1388 = vmatprep.subr.mxu0 0.0
    %1389 = vmatpush1.msra.mxu0 0.0
    %1390 = vmatprep.subr.mxu0 0.0
    %1391 = vmatpush1.msra.mxu0 0.0
    %1392 = vmatprep.subr.mxu0 0.0
    %1393 = vmatpush1.msra.mxu0 0.0
    %1394 = vmatprep.subr.mxu0 0.0
    %1395 = vmatpush1.msra.mxu0 0.0
    %1396 = vmatprep.subr.mxu0 0.0
    %1397 = vmatpush1.msra.mxu0 0.0
    %1398 = vmatprep.subr.mxu0 0.0
    %1399 = vmatpush1.msra.mxu0 0.0
    %1400 = vmatprep.subr.mxu0 0.0
    %1401 = vmatpush1.msra.mxu0 0.0
    %1402 = vmatprep.subr.mxu0 0.0
    %1403 = vmatpush1.msra.mxu0 0.0
    %1404 = vmatprep.subr.mxu0 0.0
    %1405 = vmatpush1.msra.mxu0 0.0
    %1406 = vmatprep.mubr.f32.mxu0 0.0
    %1407 = vmatmul.mubr.f32.gmra.mrb[0].mxu0 %v1340
    %v1408 = vpop.f32.mrb[0].mxu0
    %v1409 = vadd.f32 0.0, %v1408
    %v1410 = vpop.f32.mrb[0].mxu0
    %1411 = vdwg.mxu0
    %1413 = vrot.lane.b32.xlu0 %v1409, 32
    %v1414 = vpop.permute.xlu0 %1413
    %v1416 = vadd.f32 %v122, %v1414
    %v1417 = vtanh.pop %v1416
    %vm1418 = vcmask 1040384
    %v1419 = vsel %vm1418, %v208, %v363
    %vm1420 = vcmask 1041408
    %v1421 = vsel %vm1420, %v1419, %v525
    %vm1422 = vcmask 1042432
    %v1423 = vsel %vm1422, %v1421, %v687
    %vm1424 = vcmask 1043456
    %v1425 = vsel %vm1424, %v1423, %v849
    %vm1426 = vcmask 1044480
    %v1427 = vsel %vm1426, %v1425, %v1011
    %vm1428 = vcmask 1045504
    %v1429 = vsel %vm1428, %v1427, %v1173
    %vm1430 = vcmask 1046528
    %v1431 = vsel %vm1430, %v1429, %v1335
    %v1432 = vsel %vm1418, %v1417, %v1256
    %v1433 = vsel %vm1420, %v1432, %v1094
    %v1434 = vsel %vm1422, %v1433, %v932
    %v1435 = vsel %vm1424, %v1434, %v770
    %v1436 = vsel %vm1426, %v1435, %v608
    %v1437 = vsel %vm1428, %v1436, %v446
    %v1438 = vsel %vm1430, %v1437, %v285
    %v1439 = vsel %vm133, %v1431, %v1438
    %v1440 = vld [vmem:[%s5] sm:$0xff]
    %v1441 = vld [vmem:[%s5 + $0x8] sm:$0xff]
    %v1442 = vld [vmem:[%s5 + $0x10] sm:$0xff]
    %v1443 = vld [vmem:[%s5 + $0x18] sm:$0xff]
    %v1444 = vld [vmem:[%s5 + $0x20] sm:$0xff]
    %v1445 = vld [vmem:[%s5 + $0x28] sm:$0xff]
    %v1446 = vld [vmem:[%s5 + $0x30] sm:$0xff]
    %v1447 = vld [vmem:[%s5 + $0x38] sm:$0xff]
    %v1448 = vld [vmem:[%s6] sm:$0x1]
    %v1450 = vlaneseq
    %v1451 = vshrl.u32 %v1450, 7
    %v1452 = vsub.s32 0, %v1451
    %v1453 = vrot.slane %v1448, %v1452
    %vm1455 = vcmask 523264
    %v1457 = vsel %vm1455, %v1439, 0
    %1459 = vmatprep.subr.mxu0 0.0
    %1460 = vmatpush1.msra.mxu0 %v1440
    %1461 = vmatprep.subr.mxu0 0.0
    %1462 = vmatpush1.msra.mxu0 %v1441
    %1463 = vmatprep.subr.mxu0 0.0
    %1464 = vmatpush1.msra.mxu0 %v1442
    %1465 = vmatprep.subr.mxu0 0.0
    %1466 = vmatpush1.msra.mxu0 %v1443
    %1467 = vmatprep.subr.mxu0 0.0
    %1468 = vmatpush1.msra.mxu0 %v1444
    %1469 = vmatprep.subr.mxu0 0.0
    %1470 = vmatpush1.msra.mxu0 %v1445
    %1471 = vmatprep.subr.mxu0 0.0
    %1472 = vmatpush1.msra.mxu0 %v1446
    %1473 = vmatprep.subr.mxu0 0.0
    %1474 = vmatpush1.msra.mxu0 %v1447
    %1475 = vmatprep.subr.mxu0 0.0
    %1476 = vmatpush1.msra.mxu0 0.0
    %1477 = vmatprep.subr.mxu0 0.0
    %1478 = vmatpush1.msra.mxu0 0.0
    %1479 = vmatprep.subr.mxu0 0.0
    %1480 = vmatpush1.msra.mxu0 0.0
    %1481 = vmatprep.subr.mxu0 0.0
    %1482 = vmatpush1.msra.mxu0 0.0
    %1483 = vmatprep.subr.mxu0 0.0
    %1484 = vmatpush1.msra.mxu0 0.0
    %1485 = vmatprep.subr.mxu0 0.0
    %1486 = vmatpush1.msra.mxu0 0.0
    %1487 = vmatprep.subr.mxu0 0.0
    %1488 = vmatpush1.msra.mxu0 0.0
    %1489 = vmatprep.subr.mxu0 0.0
    %1490 = vmatpush1.msra.mxu0 0.0
    %1491 = vmatprep.subr.mxu0 0.0
    %1492 = vmatpush1.msra.mxu0 0.0
    %1493 = vmatprep.subr.mxu0 0.0
    %1494 = vmatpush1.msra.mxu0 0.0
    %1495 = vmatprep.subr.mxu0 0.0
    %1496 = vmatpush1.msra.mxu0 0.0
    %1497 = vmatprep.subr.mxu0 0.0
    %1498 = vmatpush1.msra.mxu0 0.0
    %1499 = vmatprep.subr.mxu0 0.0
    %1500 = vmatpush1.msra.mxu0 0.0
    %1501 = vmatprep.subr.mxu0 0.0
    %1502 = vmatpush1.msra.mxu0 0.0
    %1503 = vmatprep.subr.mxu0 0.0
    %1504 = vmatpush1.msra.mxu0 0.0
    %1505 = vmatprep.subr.mxu0 0.0
    %1506 = vmatpush1.msra.mxu0 0.0
    %1507 = vmatprep.subr.mxu0 0.0
    %1508 = vmatpush1.msra.mxu0 0.0
    %1509 = vmatprep.subr.mxu0 0.0
    %1510 = vmatpush1.msra.mxu0 0.0
    %1511 = vmatprep.subr.mxu0 0.0
    %1512 = vmatpush1.msra.mxu0 0.0
    %1513 = vmatprep.subr.mxu0 0.0
    %1514 = vmatpush1.msra.mxu0 0.0
    %1515 = vmatprep.subr.mxu0 0.0
    %1516 = vmatpush1.msra.mxu0 0.0
    %1517 = vmatprep.subr.mxu0 0.0
    %1518 = vmatpush1.msra.mxu0 0.0
    %1519 = vmatprep.subr.mxu0 0.0
    %1520 = vmatpush1.msra.mxu0 0.0
    %1521 = vmatprep.subr.mxu0 0.0
    %1522 = vmatpush1.msra.mxu0 0.0
    %1523 = vmatprep.mubr.f32.mxu0 0.0
    %1524 = vmatmul.mubr.f32.gmra.mrb[0].mxu0 %v1457
    %v1525 = vpop.f32.mrb[0].mxu0
    %v1526 = vadd.f32 %v1453, %v1525
    %v1527 = vpop.f32.mrb[0].mxu0
    %1528 = vdwg.mxu0
    %vm1529 = vcmask 64512
    %1530 = vst.msk [vmem:[#allocation5] sm:$0xff] %vm1529, %v1526
    // Predicated region
    $region34: #{tpu_custom_call.1} parent=1 // pred_check
      _
    $region35: #{tpu_custom_call.1} parent=1 // pred_check_branch
      %1532 = sbr.rel (0) target = $region37
    $region36: #{tpu_custom_call.1} parent=1 // pred_region
      %s1534 = ssub.s32 128, 128
      %1535 = vsyncadd [#allocation4], %s1534
      %s1537 = sshll.u32 [#allocation5], 4
      %s1538 = int_to_ptr.vmem [resolvable:$true] %s1537
      %1540 = dma.vmem_to_hbm [thread:$0]  %s1538, 128, %s7, [#allocation4]
    $region37: #{tpu_custom_call.1} parent=1 // pred_fallthru
      _
    // Predicated region
    $region38: #{tpu_custom_call.1} parent=1 // pred_check
      _
    $region39: #{tpu_custom_call.1} parent=1 // pred_check_branch
      %1542 = sbr.rel (0) target = $region41
    $region40: #{tpu_custom_call.1} parent=1 // pred_region
      %1543 = dma.done [#allocation4], 128
    $region41: #{tpu_custom_call.1} parent=1 // pred_fallthru
      _
    %1544 = vsyncpa [#allocation3], 1
    %1545 = vsyncpa [#allocation4], 1

</llo_original>
